<compile_context>
chip_gen: v6e
topology: v6e:2x2x1
jax: 0.10.0
libtpu: 0.0.40
codegen_flags: <defaults>
</compile_context>

<pallas_src>
import jax
import jax.numpy as jnp
from jax.experimental import pallas as pl
from jax.experimental.pallas import tpu as pltpu


def _cdiv(a, b):
    return (a + b - 1) // b


def _round_up(x, m):
    return _cdiv(x, m) * m


# ---------------------------------------------------------------------------
# Pallas kernel: fused GRU3d update for one row-tile
# ---------------------------------------------------------------------------
def gru3d_kernel(x_ref, c_ref, wx_ref, wc_ref, o_ref):
    """x_ref, c_ref: (tm, Hp) bf16 tiles; wx_ref, wc_ref: (Hp, 3*Hp) bf16 packed weights;
    o_ref: (tm, Hp) f32 output tile."""
    hp = o_ref.shape[-1]

    x = x_ref[...]                       # bf16 -> straight to the MXU
    c = c_ref[...]
    x32 = x.astype(jnp.float32)          # f32 for the VPU/EUP gate math (v5e has no bf16 VPU)

    # Two wide MXU matmuls (f32 accumulation) instead of six narrow ones.
    gx = jnp.dot(x, wx_ref[...], preferred_element_type=jnp.float32)   # (tm, 3*Hp)
    gc = jnp.dot(c, wc_ref[...], preferred_element_type=jnp.float32)   # (tm, 3*Hp)

    # Gate slices are lane-aligned because Hp % 128 == 0.
    z = jax.nn.sigmoid(gx[:, :hp] + gc[:, :hp])
    r = jax.nn.sigmoid(gx[:, hp:2 * hp] + gc[:, hp:2 * hp])
    h_hat = jnp.tanh(gx[:, 2 * hp:] + r * gc[:, 2 * hp:])

    o_ref[...] = ((1.0 - z) * x32 + z * h_hat).astype(o_ref.dtype)


# ---------------------------------------------------------------------------
# pallas_call builder
# ---------------------------------------------------------------------------
def _build_call(n_rows, hp, tm, grid, weight_pipeline_mode):
    row_spec = pl.BlockSpec((tm, hp), lambda i: (i, 0))
    w_kwargs = {} if weight_pipeline_mode is None else dict(pipeline_mode=weight_pipeline_mode)
    w_spec = pl.BlockSpec((hp, 3 * hp), lambda i: (0, 0), **w_kwargs)

    flops = 2 * 2 * grid * tm * hp * (3 * hp) + 10 * grid * tm * hp   # 2 matmuls + gate math
    transcendentals = 3 * grid * tm * hp                              # 2 sigmoid + 1 tanh / elem
    bytes_accessed = (2 * (2 * n_rows * hp)        # x, c (bf16)
                      + 4 * n_rows * hp            # out (f32)
                      + 2 * (2 * hp * 3 * hp))     # packed weights (bf16)

    return pl.pallas_call(
        gru3d_kernel,
        out_shape=jax.ShapeDtypeStruct((n_rows, hp), jnp.float32),
        grid_spec=pltpu.PrefetchScalarGridSpec(
            num_scalar_prefetch=0,
            grid=(grid,),
            in_specs=[row_spec, row_spec, w_spec, w_spec],
            out_specs=pl.BlockSpec((tm, hp), lambda i: (i, 0)),
        ),
        compiler_params=pltpu.CompilerParams(
            dimension_semantics=("parallel",),
            vmem_limit_bytes=48 * 1024 * 1024,
        ),
        cost_estimate=pl.CostEstimate(
            flops=flops,
            transcendentals=transcendentals,
            bytes_accessed=bytes_accessed,
        ),
    )


# ---------------------------------------------------------------------------
# Wrapper
# ---------------------------------------------------------------------------
def gru3d_forward(params, x, c, *, tile_m=1024):
    """x: (B, N, H), c: (B, N, H) -> (B, N, H) float32."""
    B, N, H = x.shape
    assert c.shape == (B, N, H), (c.shape, x.shape)
    M = B * N
    Hp = _round_up(max(H, 128), 128)     # lane-dense feature axis

    # Pack + zero-pad the six (H,H) weights into two (Hp, 3Hp) bf16 matrices.
    def _pad_w(w):
        return jnp.pad(w, ((0, Hp - H), (0, Hp - H)))

    wx = jnp.concatenate(
        [_pad_w(params["w_z"]), _pad_w(params["w_r"]), _pad_w(params["w"])], axis=1
    ).astype(jnp.bfloat16)
    wc = jnp.concatenate(
        [_pad_w(params["u_z"]), _pad_w(params["u_r"]), _pad_w(params["u"])], axis=1
    ).astype(jnp.bfloat16)

    # Activations: flatten rows, zero-pad features to Hp, cast to bf16 for the MXU
    # (cast is fused with the pad; in a real model x/c would already be bf16).
    def _prep(a):
        a = a.reshape(M, H)
        if Hp != H:
            a = jnp.pad(a, ((0, 0), (0, Hp - H)))
        return a.astype(jnp.bfloat16)

    xb = _prep(x)
    cb = _prep(c)

    # Row tile: multiple of 16 (bf16 sublane packing), at least 2 tiles so both v7x
    # TensorCores run, capped by a VMEM budget that also fits v7x (64 MiB physical).
    tm = min(tile_m, max(16, _round_up(_cdiv(M, 2), 16)))
    budget = 40 * 1024 * 1024
    weight_bytes = 2 * (Hp * 3 * Hp * 2) * 2        # two packed bf16 weights, <=2 buffers each
    per_row_bytes = 60 * Hp                          # x/c/out tiles (dbl-buffered) + f32 gate temps
    if budget > weight_bytes:
        tm_cap = max(16, ((budget - weight_bytes) // per_row_bytes) // 16 * 16)
    else:
        tm_cap = 16  # TODO(synk): for Hp >= 2048 also tile the packed 3*Hp gate axis.
    tm = min(tm, tm_cap)
    grid = _cdiv(M, tm)   # ragged last block is masked by Pallas; rows are independent

    args = (xb, cb, wx, wc)
    try:
        # Single-buffer the resident weights (constant index_map -> fetched once).
        out = _build_call(M, Hp, tm, grid, pl.Buffered(1))(*args)
    except Exception:
        # Fallback if this JAX build does not honor pipeline_mode on top-level BlockSpecs.
        out = _build_call(M, Hp, tm, grid, None)(*args)

    if Hp != H:
        out = out[:, :H]
    return out.reshape(B, N, H)


# ---------------------------------------------------------------------------
# Parameters (reset_parameters: normal(mean=0, std=0.1))
# ---------------------------------------------------------------------------
def init_params(key, hidden):
    names = ["w_z", "u_z", "w_r", "u_r", "w", "u"]
    keys = jax.random.split(key, len(names))
    return {n: 0.1 * jax.random.normal(k, (hidden, hidden), jnp.float32)
            for n, k in zip(names, keys)}


# ---------------------------------------------------------------------------
# Main
# ---------------------------------------------------------------------------
if __name__ == "__main__":
    HIDDEN = 32
    B, N = 2, 16

    key = jax.random.PRNGKey(0)
    k_x, k_c, k_p = jax.random.split(key, 3)

    x = jax.random.normal(k_x, (B, N, HIDDEN), jnp.float32)
    c = jax.random.normal(k_c, (B, N, HIDDEN), jnp.float32)
    params = init_params(k_p, HIDDEN)

    out = jax.block_until_ready(gru3d_forward(params, x, c))

    # Pure-JAX f32 reference of the same forward (correctness gate).
    z = jax.nn.sigmoid(x @ params["w_z"] + c @ params["u_z"])
    r = jax.nn.sigmoid(x @ params["w_r"] + c @ params["u_r"])
    h_hat = jnp.tanh(x @ params["w"] + r * (c @ params["u"]))
    ref = (1.0 - z) * x + z * h_hat

    assert out.shape == (B, N, HIDDEN), out.shape
    assert bool(jnp.all(jnp.isfinite(out)))
    max_err = float(jnp.max(jnp.abs(out - ref)))
    # bf16 MXU operands with f32 accumulation -> error bounded by input rounding (~1e-2).
    assert max_err < 5e-2, max_err
    print("KERNEL_OK")
</pallas_src>

<mosaic_0001>
module attributes {stable_mosaic.version = 11 : i64} {
  func.func @gru3d_kernel(%arg0: i32, %arg1: memref<16x128xbf16, #tpu.memory_space<vmem>>, %arg2: memref<16x128xbf16, #tpu.memory_space<vmem>>, %arg3: memref<128x384xbf16, #tpu.memory_space<vmem>>, %arg4: memref<128x384xbf16, #tpu.memory_space<vmem>>, %arg5: memref<16x128xf32, #tpu.memory_space<vmem>>) attributes {dimension_semantics = [#tpu.dimension_semantics<parallel>], iteration_bounds = array<i64: 2>, scalar_prefetch = 0 : i64, scratch_operands = 0 : i64, tpu.core_type = #tpu.core_type<tc>, window_params = [{transform_indices = @transform_0, window_bounds = array<i64: 16, 128>}, {transform_indices = @transform_1, window_bounds = array<i64: 16, 128>}, {pipeline_mode = #tpu.pipeline_mode<synchronous>, transform_indices = @transform_2, window_bounds = array<i64: 128, 384>}, {pipeline_mode = #tpu.pipeline_mode<synchronous>, transform_indices = @transform_3, window_bounds = array<i64: 128, 384>}, {transform_indices = @transform_4, window_bounds = array<i64: 16, 128>}]} {
    %c0 = arith.constant 0 : index
    %c0_0 = arith.constant 0 : index
    %0 = vector.load %arg1[%c0, %c0_0] : memref<16x128xbf16, #tpu.memory_space<vmem>>, vector<16x128xbf16>
    %c0_1 = arith.constant 0 : index
    %c0_2 = arith.constant 0 : index
    %1 = vector.load %arg2[%c0_1, %c0_2] : memref<16x128xbf16, #tpu.memory_space<vmem>>, vector<16x128xbf16>
    %2 = arith.extf %0 : vector<16x128xbf16> to vector<16x128xf32>
    %c0_3 = arith.constant 0 : index
    %c0_4 = arith.constant 0 : index
    %3 = vector.load %arg3[%c0_3, %c0_4] : memref<128x384xbf16, #tpu.memory_space<vmem>>, vector<128x384xbf16>
    %cst = arith.constant dense<0.000000e+00> : vector<16x384xf32>
    %4 = tpu.matmul %0, %3, %cst {dimension_numbers = #tpu.dot_dimension_numbers<[1], [0], [0], [1], [0, 0, 1, 1], [], []>} : vector<16x128xbf16>, vector<128x384xbf16>, vector<16x384xf32> -> vector<16x384xf32>
    %c0_5 = arith.constant 0 : index
    %c0_6 = arith.constant 0 : index
    %5 = vector.load %arg4[%c0_5, %c0_6] : memref<128x384xbf16, #tpu.memory_space<vmem>>, vector<128x384xbf16>
    %cst_7 = arith.constant dense<0.000000e+00> : vector<16x384xf32>
    %6 = tpu.matmul %1, %5, %cst_7 {dimension_numbers = #tpu.dot_dimension_numbers<[1], [0], [0], [1], [0, 0, 1, 1], [], []>} : vector<16x128xbf16>, vector<128x384xbf16>, vector<16x384xf32> -> vector<16x384xf32>
    %7 = vector.extract_strided_slice %4 {offsets = [0, 0], sizes = [16, 128], strides = [1, 1]} : vector<16x384xf32> to vector<16x128xf32>
    %8 = vector.extract_strided_slice %6 {offsets = [0, 0], sizes = [16, 128], strides = [1, 1]} : vector<16x384xf32> to vector<16x128xf32>
    %9 = arith.addf %7, %8 : vector<16x128xf32>
    %10 = arith.negf %9 : vector<16x128xf32>
    %11 = math.exp %10 : vector<16x128xf32>
    %cst_8 = arith.constant 1.000000e+00 : f32
    %12 = vector.broadcast %cst_8 : f32 to vector<16x128xf32>
    %13 = arith.addf %12, %11 : vector<16x128xf32>
    %14 = arith.divf %12, %13 : vector<16x128xf32>
    %15 = vector.extract_strided_slice %4 {offsets = [0, 128], sizes = [16, 128], strides = [1, 1]} : vector<16x384xf32> to vector<16x128xf32>
    %16 = vector.extract_strided_slice %6 {offsets = [0, 128], sizes = [16, 128], strides = [1, 1]} : vector<16x384xf32> to vector<16x128xf32>
    %17 = arith.addf %15, %16 : vector<16x128xf32>
    %18 = arith.negf %17 : vector<16x128xf32>
    %19 = math.exp %18 : vector<16x128xf32>
    %cst_9 = arith.constant 1.000000e+00 : f32
    %20 = vector.broadcast %cst_9 : f32 to vector<16x128xf32>
    %21 = arith.addf %20, %19 : vector<16x128xf32>
    %22 = arith.divf %20, %21 : vector<16x128xf32>
    %23 = vector.extract_strided_slice %4 {offsets = [0, 256], sizes = [16, 128], strides = [1, 1]} : vector<16x384xf32> to vector<16x128xf32>
    %24 = vector.extract_strided_slice %6 {offsets = [0, 256], sizes = [16, 128], strides = [1, 1]} : vector<16x384xf32> to vector<16x128xf32>
    %25 = arith.mulf %22, %24 : vector<16x128xf32>
    %26 = arith.addf %23, %25 : vector<16x128xf32>
    %27 = math.tanh %26 : vector<16x128xf32>
    %cst_10 = arith.constant 1.000000e+00 : f32
    %28 = vector.broadcast %cst_10 : f32 to vector<16x128xf32>
    %29 = arith.subf %28, %14 : vector<16x128xf32>
    %30 = arith.mulf %29, %2 : vector<16x128xf32>
    %31 = arith.mulf %14, %27 : vector<16x128xf32>
    %32 = arith.addf %30, %31 : vector<16x128xf32>
    %c0_11 = arith.constant 0 : index
    %c0_12 = arith.constant 0 : index
    %33 = vector.load %arg5[%c0_11, %c0_12] : memref<16x128xf32, #tpu.memory_space<vmem>>, vector<16x128xf32>
    tpu.vector_store %arg5[%c0_11, %c0_12], %32 {strides = array<i32>} : memref<16x128xf32, #tpu.memory_space<vmem>>, vector<16x128xf32>,
    return
  }
  func.func @transform_0(%arg0: i32) -> (i32, i32) {
    %c0_i32 = arith.constant 0 : i32
    %c0_i32_0 = arith.constant 0 : i32
    return %arg0, %c0_i32 : i32, i32
  }
  func.func @transform_1(%arg0: i32) -> (i32, i32) {
    %c0_i32 = arith.constant 0 : i32
    %c0_i32_0 = arith.constant 0 : i32
    return %arg0, %c0_i32 : i32, i32
  }
  func.func @transform_2(%arg0: i32) -> (i32, i32) {
    %c0_i32 = arith.constant 0 : i32
    %c0_i32_0 = arith.constant 0 : i32
    %c0_i32_1 = arith.constant 0 : i32
    return %c0_i32, %c0_i32_0 : i32, i32
  }
  func.func @transform_3(%arg0: i32) -> (i32, i32) {
    %c0_i32 = arith.constant 0 : i32
    %c0_i32_0 = arith.constant 0 : i32
    %c0_i32_1 = arith.constant 0 : i32
    return %c0_i32, %c0_i32_0 : i32, i32
  }
  func.func @transform_4(%arg0: i32) -> (i32, i32) {
    %c0_i32 = arith.constant 0 : i32
    %c0_i32_0 = arith.constant 0 : i32
    return %arg0, %c0_i32 : i32, i32
  }
}

module attributes {stable_mosaic.version = 11 : i64} {
  func.func @gru3d_kernel(%arg0: i32, %arg1: memref<16x128xbf16, #tpu.memory_space<vmem>>, %arg2: memref<16x128xbf16, #tpu.memory_space<vmem>>, %arg3: memref<128x384xbf16, #tpu.memory_space<vmem>>, %arg4: memref<128x384xbf16, #tpu.memory_space<vmem>>, %arg5: memref<16x128xf32, #tpu.memory_space<vmem>>) attributes {dimension_semantics = [#tpu.dimension_semantics<parallel>], iteration_bounds = array<i64: 2>, scalar_prefetch = 0 : i64, scratch_operands = 0 : i64, tpu.core_type = #tpu.core_type<tc>, window_params = [{transform_indices = @transform_0, window_bounds = array<i64: 16, 128>}, {transform_indices = @transform_1, window_bounds = array<i64: 16, 128>}, {pipeline_mode = #tpu.pipeline_mode<synchronous>, transform_indices = @transform_2, window_bounds = array<i64: 128, 384>}, {pipeline_mode = #tpu.pipeline_mode<synchronous>, transform_indices = @transform_3, window_bounds = array<i64: 128, 384>}, {transform_indices = @transform_4, window_bounds = array<i64: 16, 128>}]} {
    %c0 = arith.constant 0 : index
    %c0_0 = arith.constant 0 : index
    %0 = vector.load %arg1[%c0, %c0_0] : memref<16x128xbf16, #tpu.memory_space<vmem>>, vector<16x128xbf16>
    %c0_1 = arith.constant 0 : index
    %c0_2 = arith.constant 0 : index
    %1 = vector.load %arg2[%c0_1, %c0_2] : memref<16x128xbf16, #tpu.memory_space<vmem>>, vector<16x128xbf16>
    %2 = arith.extf %0 : vector<16x128xbf16> to vector<16x128xf32>
    %c0_3 = arith.constant 0 : index
    %c0_4 = arith.constant 0 : index
    %3 = vector.load %arg3[%c0_3, %c0_4] : memref<128x384xbf16, #tpu.memory_space<vmem>>, vector<128x384xbf16>
    %cst = arith.constant dense<0.000000e+00> : vector<16x384xf32>
    %4 = tpu.matmul %0, %3, %cst {dimension_numbers = #tpu.dot_dimension_numbers<[1], [0], [0], [1], [0, 0, 1, 1], [], []>} : vector<16x128xbf16>, vector<128x384xbf16>, vector<16x384xf32> -> vector<16x384xf32>
    %c0_5 = arith.constant 0 : index
    %c0_6 = arith.constant 0 : index
    %5 = vector.load %arg4[%c0_5, %c0_6] : memref<128x384xbf16, #tpu.memory_space<vmem>>, vector<128x384xbf16>
    %cst_7 = arith.constant dense<0.000000e+00> : vector<16x384xf32>
    %6 = tpu.matmul %1, %5, %cst_7 {dimension_numbers = #tpu.dot_dimension_numbers<[1], [0], [0], [1], [0, 0, 1, 1], [], []>} : vector<16x128xbf16>, vector<128x384xbf16>, vector<16x384xf32> -> vector<16x384xf32>
    %7 = vector.extract_strided_slice %4 {offsets = [0, 0], sizes = [16, 128], strides = [1, 1]} : vector<16x384xf32> to vector<16x128xf32>
    %8 = vector.extract_strided_slice %6 {offsets = [0, 0], sizes = [16, 128], strides = [1, 1]} : vector<16x384xf32> to vector<16x128xf32>
    %9 = arith.addf %7, %8 : vector<16x128xf32>
    %10 = arith.negf %9 : vector<16x128xf32>
    %11 = math.exp %10 : vector<16x128xf32>
    %cst_8 = arith.constant 1.000000e+00 : f32
    %12 = vector.broadcast %cst_8 : f32 to vector<16x128xf32>
    %13 = arith.addf %12, %11 : vector<16x128xf32>
    %14 = arith.divf %12, %13 : vector<16x128xf32>
    %15 = vector.extract_strided_slice %4 {offsets = [0, 128], sizes = [16, 128], strides = [1, 1]} : vector<16x384xf32> to vector<16x128xf32>
    %16 = vector.extract_strided_slice %6 {offsets = [0, 128], sizes = [16, 128], strides = [1, 1]} : vector<16x384xf32> to vector<16x128xf32>
    %17 = arith.addf %15, %16 : vector<16x128xf32>
    %18 = arith.negf %17 : vector<16x128xf32>
    %19 = math.exp %18 : vector<16x128xf32>
    %cst_9 = arith.constant 1.000000e+00 : f32
    %20 = vector.broadcast %cst_9 : f32 to vector<16x128xf32>
    %21 = arith.addf %20, %19 : vector<16x128xf32>
    %22 = arith.divf %20, %21 : vector<16x128xf32>
    %23 = vector.extract_strided_slice %4 {offsets = [0, 256], sizes = [16, 128], strides = [1, 1]} : vector<16x384xf32> to vector<16x128xf32>
    %24 = vector.extract_strided_slice %6 {offsets = [0, 256], sizes = [16, 128], strides = [1, 1]} : vector<16x384xf32> to vector<16x128xf32>
    %25 = arith.mulf %22, %24 : vector<16x128xf32>
    %26 = arith.addf %23, %25 : vector<16x128xf32>
    %27 = math.tanh %26 : vector<16x128xf32>
    %cst_10 = arith.constant 1.000000e+00 : f32
    %28 = vector.broadcast %cst_10 : f32 to vector<16x128xf32>
    %29 = arith.subf %28, %14 : vector<16x128xf32>
    %30 = arith.mulf %29, %2 : vector<16x128xf32>
    %31 = arith.mulf %14, %27 : vector<16x128xf32>
    %32 = arith.addf %30, %31 : vector<16x128xf32>
    %c0_11 = arith.constant 0 : index
    %c0_12 = arith.constant 0 : index
    %33 = vector.load %arg5[%c0_11, %c0_12] : memref<16x128xf32, #tpu.memory_space<vmem>>, vector<16x128xf32>
    tpu.vector_store %arg5[%c0_11, %c0_12], %32 {strides = array<i32>} : memref<16x128xf32, #tpu.memory_space<vmem>>, vector<16x128xf32>,
    return
  }
  func.func @transform_0(%arg0: i32) -> (i32, i32) {
    %c0_i32 = arith.constant 0 : i32
    %c0_i32_0 = arith.constant 0 : i32
    return %arg0, %c0_i32 : i32, i32
  }
  func.func @transform_1(%arg0: i32) -> (i32, i32) {
    %c0_i32 = arith.constant 0 : i32
    %c0_i32_0 = arith.constant 0 : i32
    return %arg0, %c0_i32 : i32, i32
  }
  func.func @transform_2(%arg0: i32) -> (i32, i32) {
    %c0_i32 = arith.constant 0 : i32
    %c0_i32_0 = arith.constant 0 : i32
    %c0_i32_1 = arith.constant 0 : i32
    return %c0_i32, %c0_i32_0 : i32, i32
  }
  func.func @transform_3(%arg0: i32) -> (i32, i32) {
    %c0_i32 = arith.constant 0 : i32
    %c0_i32_0 = arith.constant 0 : i32
    %c0_i32_1 = arith.constant 0 : i32
    return %c0_i32, %c0_i32_0 : i32, i32
  }
  func.func @transform_4(%arg0: i32) -> (i32, i32) {
    %c0_i32 = arith.constant 0 : i32
    %c0_i32_0 = arith.constant 0 : i32
    return %arg0, %c0_i32 : i32, i32
  }
}

</mosaic_0001>

<llo_original>
// kernel: tpu_custom_call.1
$region0: #{tpu_custom_call.1}
  #allocation0 [shape = 'u32[]', space=smem, size = 0x4, offset = 0x4, fixed_abs, tag = 'smem constant byte address 0x4 - core index']
  #allocation1 [shape = 'u32[144,128]{1,0:T(1,128)}', space=vmem, size = 0x12000, scoped, tag = 'internal scratch']
  %s0 = inlined_call_operand.hbm [shape: bf16[32,128], index: 0, kind: input, shape index: {}]
  %s1 = inlined_call_operand.hbm [shape: bf16[32,128], index: 1, kind: input, shape index: {}]
  %s2 = inlined_call_operand.hbm [shape: bf16[128,384], index: 2, kind: input, shape index: {}]
  %s3 = inlined_call_operand.hbm [shape: bf16[128,384], index: 3, kind: input, shape index: {}]
  %s4 = inlined_call_operand.hbm [shape: f32[32,128], index: 4, kind: output, shape index: {}]
  %s5 = sld [smem:[#allocation0]]
  $region65: #{tpu_custom_call.1} parent=0
    _
  %s7 = ssub.s32 1, %s5
  %s8 = scalar_select 0, %s7, %s5
  $region1: #{tpu_custom_call.1} parent=0
    #allocation2 [shape = 'u8[8192]{0}', space=vmem, size = 0x2000, scoped, tag = 'input window, operand 0']
    #allocation3 [shape = 's32[2]{0}', space=sflag, size = 0x8, scoped, tag = 'scoped memory for tpu_custom_call.1']
    #allocation4 [shape = 's32[2]{0}', space=sflag, size = 0x8, scoped, tag = 'scoped memory for tpu_custom_call.1']
    #allocation5 [shape = 'u8[8192]{0}', space=vmem, size = 0x2000, scoped, tag = 'input window, operand 1']
    #allocation6 [shape = 's32[2]{0}', space=sflag, size = 0x8, scoped, tag = 'scoped memory for tpu_custom_call.1']
    #allocation7 [shape = 'u8[98304]{0}', space=vmem, size = 0x18000, scoped, tag = 'input window, operand 2, single buffered']
    #allocation8 [shape = 'u8[98304]{0}', space=vmem, size = 0x18000, scoped, tag = 'input window, operand 3, single buffered']
    #allocation9 [shape = 's32[1]{0}', space=sflag, size = 0x4, scoped, tag = 'scoped memory for tpu_custom_call.1']
    #allocation10 [shape = 'u8[16384]{0}', space=vmem, size = 0x4000, scoped, tag = 'output window, operand 0']
    %9 = vsyncpa [#allocation3], 0
    %s10 = scalar_lea.sflag [#allocation3], 1
    %11 = vsyncpa %s10, 0
    %12 = vsyncpa [#allocation6], 0
    %s13 = scalar_lea.sflag [#allocation6], 1
    %14 = vsyncpa %s13, 0
    %15 = vsyncpa [#allocation9], 0
    %16 = vsyncpa [#allocation4], 0
    %s17 = scalar_lea.sflag [#allocation4], 1
    %18 = vsyncpa %s17, 0
    loop: start=0, step=1, limit=4
    $region2: #{tpu_custom_call.1} parent=1 // loop_pre_header
      _
    $region3: #{tpu_custom_call.1} parent=1 // loop_header
      %s20 = sphi 0, %s24
      %p21 = scmp.ge.s32.totalorder %s20, 4
      %s30 = sphi 0, %s32
      %s33 = sphi 0, %s30
      %s34 = sphi 0, %s33
      %s50 = sphi 0, %s34
      %s56 = sphi 0, %s58
      %s59 = sphi 0, %s56
      %s60 = sphi 0, %s59
      %s76 = sphi 0, %s60
      %s80 = sphi 0, %s80
      %s82 = sphi 0, %s80
      %s83 = sphi 0, %s82
      %s97 = sphi 0, %s83
      %s101 = sphi 0, %s101
      %s103 = sphi 0, %s101
      %s104 = sphi 0, %s103
      %s118 = sphi 0, %s104
      %s124 = sphi 0, %s126
      %s127 = sphi 0, %s124
      %s128 = sphi 0, %s127
      %s144 = sphi 0, %s128
    $region4: #{tpu_custom_call.1} parent=1 // loop_header_branch
      %23 = sbr.rel (%p21) target = $region8
    $region5: #{tpu_custom_call.1} parent=1 // loop_body
      %s25 = ssub.s32 %s20, 1
      %s26 = ssub.s32 %s20, 2
      %s27 = sadd.s32 %s20, 1
      %s28 = ssub.s32 %s20, %s27
      %p29 = scmp.eq.s32.totalorder %s28, 0
      %s31 = sadd.s32 %s30, 1
      %s32 = scalar_select %p29, %s30, %s31
      %p35 = pneg %p29
      %p36 = scmp.eq.s32.totalorder %s20, 1
      %p37 = por %p35, %p36
      %p38 = scmp.ne.s32.totalorder %s30, %s33
      %p39 = scmp.eq.s32.totalorder %s20, 0
      %p40 = por %p38, %p39
      %p41 = scmp.ne.s32.totalorder %s30, %s33
      %p42 = scmp.eq.s32.totalorder %s25, 1
      %p43 = por %p41, %p42
      %p44 = scmp.ne.s32.totalorder %s33, %s34
      %p45 = scmp.eq.s32.totalorder %s25, 0
      %p46 = por %p44, %p45
      %p47 = scmp.ne.s32.totalorder %s33, %s34
      %p48 = scmp.eq.s32.totalorder %s26, 1
      %p49 = por %p47, %p48
      %p51 = scmp.ne.s32.totalorder %s34, %s50
      %p52 = scmp.eq.s32.totalorder %s26, 0
      %p53 = por %p51, %p52
      %s54 = ssub.s32 %s20, %s27
      %p55 = scmp.eq.s32.totalorder %s54, 0
      %s57 = sadd.s32 %s56, 1
      %s58 = scalar_select %p55, %s56, %s57
      %p61 = pneg %p55
      %p62 = scmp.eq.s32.totalorder %s20, 1
      %p63 = por %p61, %p62
      %p64 = scmp.ne.s32.totalorder %s56, %s59
      %p65 = scmp.eq.s32.totalorder %s20, 0
      %p66 = por %p64, %p65
      %p67 = scmp.ne.s32.totalorder %s56, %s59
      %p68 = scmp.eq.s32.totalorder %s25, 1
      %p69 = por %p67, %p68
      %p70 = scmp.ne.s32.totalorder %s59, %s60
      %p71 = scmp.eq.s32.totalorder %s25, 0
      %p72 = por %p70, %p71
      %p73 = scmp.ne.s32.totalorder %s59, %s60
      %p74 = scmp.eq.s32.totalorder %s26, 1
      %p75 = por %p73, %p74
      %p77 = scmp.ne.s32.totalorder %s60, %s76
      %p78 = scmp.eq.s32.totalorder %s26, 0
      %p79 = por %p77, %p78
      %s81 = sadd.s32 %s80, 1
      %p84 = scmp.eq.s32.totalorder %s20, 1
      %p85 = scmp.ne.s32.totalorder %s80, %s82
      %p86 = scmp.eq.s32.totalorder %s20, 0
      %p87 = por %p85, %p86
      %p88 = scmp.ne.s32.totalorder %s80, %s82
      %p89 = scmp.eq.s32.totalorder %s25, 1
      %p90 = por %p88, %p89
      %p91 = scmp.ne.s32.totalorder %s82, %s83
      %p92 = scmp.eq.s32.totalorder %s25, 0
      %p93 = por %p91, %p92
      %p94 = scmp.ne.s32.totalorder %s82, %s83
      %p95 = scmp.eq.s32.totalorder %s26, 1
      %p96 = por %p94, %p95
      %p98 = scmp.ne.s32.totalorder %s83, %s97
      %p99 = scmp.eq.s32.totalorder %s26, 0
      %p100 = por %p98, %p99
      %s102 = sadd.s32 %s101, 1
      %p105 = scmp.eq.s32.totalorder %s20, 1
      %p106 = scmp.ne.s32.totalorder %s101, %s103
      %p107 = scmp.eq.s32.totalorder %s20, 0
      %p108 = por %p106, %p107
      %p109 = scmp.ne.s32.totalorder %s101, %s103
      %p110 = scmp.eq.s32.totalorder %s25, 1
      %p111 = por %p109, %p110
      %p112 = scmp.ne.s32.totalorder %s103, %s104
      %p113 = scmp.eq.s32.totalorder %s25, 0
      %p114 = por %p112, %p113
      %p115 = scmp.ne.s32.totalorder %s103, %s104
      %p116 = scmp.eq.s32.totalorder %s26, 1
      %p117 = por %p115, %p116
      %p119 = scmp.ne.s32.totalorder %s104, %s118
      %p120 = scmp.eq.s32.totalorder %s26, 0
      %p121 = por %p119, %p120
      %s122 = ssub.s32 %s20, %s27
      %p123 = scmp.eq.s32.totalorder %s122, 0
      %s125 = sadd.s32 %s124, 1
      %s126 = scalar_select %p123, %s124, %s125
      %p129 = pneg %p123
      %p130 = scmp.eq.s32.totalorder %s20, 1
      %p131 = por %p129, %p130
      %p132 = scmp.ne.s32.totalorder %s124, %s127
      %p133 = scmp.eq.s32.totalorder %s20, 0
      %p134 = por %p132, %p133
      %p135 = scmp.ne.s32.totalorder %s124, %s127
      %p136 = scmp.eq.s32.totalorder %s25, 1
      %p137 = por %p135, %p136
      %p138 = scmp.ne.s32.totalorder %s127, %s128
      %p139 = scmp.eq.s32.totalorder %s25, 0
      %p140 = por %p138, %p139
      %p141 = scmp.ne.s32.totalorder %s127, %s128
      %p142 = scmp.eq.s32.totalorder %s26, 1
      %p143 = por %p141, %p142
      %p145 = scmp.ne.s32.totalorder %s128, %s144
      %p146 = scmp.eq.s32.totalorder %s26, 0
      %p147 = por %p145, %p146
      %p148 = scmp.le.s32.totalorder 1, %s20
      %p149 = scmp.lt.s32.totalorder %s20, 3
      %p150 = pnand %p148, %p149
      %p151 = pneg %p150
      // Predicated region
      $region9: #{tpu_custom_call.1} parent=5 // pred_check
        _
      $region10: #{tpu_custom_call.1} parent=5 // pred_check_branch
        %153 = sbr.rel (%p150) target = $region12
      $region11: #{tpu_custom_call.1} parent=5 // pred_region
        %s154 = ssub.s32 %s20, 1
        // Predicated region
        $region13: #{tpu_custom_call.1} parent=11 // pred_check
          %p155 = pneg %p93
        $region14: #{tpu_custom_call.1} parent=11 // pred_check_branch
          %157 = sbr.rel (%p155) target = $region16
        $region15: #{tpu_custom_call.1} parent=11 // pred_region
          %s159 = ssub.s32 3072, 3072
          %160 = vsyncadd [#allocation6], %s159
          %s161 = sshll.u32 [#allocation7], 4
          %s162 = int_to_ptr.vmem [resolvable:$true] %s161
          %167 = dma.hbm_to_vmem [thread:$0]  %s2, 3072, %s162, [#allocation6], 192, 192, 12
        $region16: #{tpu_custom_call.1} parent=11 // pred_fallthru
          _
        // Predicated region
        $region17: #{tpu_custom_call.1} parent=11 // pred_check
          %p168 = pneg %p114
        $region18: #{tpu_custom_call.1} parent=11 // pred_check_branch
          %170 = sbr.rel (%p168) target = $region20
        $region19: #{tpu_custom_call.1} parent=11 // pred_region
          %s172 = ssub.s32 3072, 3072
          %173 = vsyncadd [#allocation9], %s172
          %s174 = sshll.u32 [#allocation8], 4
          %s175 = int_to_ptr.vmem [resolvable:$true] %s174
          %180 = dma.hbm_to_vmem [thread:$0]  %s3, 3072, %s175, [#allocation9], 192, 192, 12
        $region20: #{tpu_custom_call.1} parent=11 // pred_fallthru
          _
      $region12: #{tpu_custom_call.1} parent=5 // pred_fallthru
        _
      %p181 = scmp.lt.s32.totalorder %s20, 2
      // Predicated region
      $region21: #{tpu_custom_call.1} parent=5 // pred_check
        %p182 = pneg %p181
      $region22: #{tpu_custom_call.1} parent=5 // pred_check_branch
        %184 = sbr.rel (%p182) target = $region24
      $region23: #{tpu_custom_call.1} parent=5 // pred_region
        // Predicated region
        $region25: #{tpu_custom_call.1} parent=23 // pred_check
          %p185 = pneg %p40
        $region26: #{tpu_custom_call.1} parent=23 // pred_check_branch
          %187 = sbr.rel (%p185) target = $region28
        $region27: #{tpu_custom_call.1} parent=23 // pred_region
          %s188 = sand.u32 %s30, 1
          %s189 = scalar_lea.sflag [#allocation3], %s188
          %s190 = sand.u32 %s30, 1
          %s191 = smul.addr %s190, 8
          %s192 = scalar_lea.vmem [#allocation2], %s191
          %s193 = smul.u32 2, %s20
          %s195 = ssub.s32 128, 128
          %196 = vsyncadd %s189, %s195
          %s197 = smul.addr %s193, 64
          %s198 = scalar_lea.hbm %s0, %s197
          %s199 = sshll.u32 %s192, 4
          %s200 = int_to_ptr.vmem [resolvable:$true] %s199
          %205 = dma.hbm_to_vmem [thread:$0]  %s198, 128, %s200, %s189, 64, 64, 4
        $region28: #{tpu_custom_call.1} parent=23 // pred_fallthru
          _
        // Predicated region
        $region29: #{tpu_custom_call.1} parent=23 // pred_check
          %p206 = pneg %p66
        $region30: #{tpu_custom_call.1} parent=23 // pred_check_branch
          %208 = sbr.rel (%p206) target = $region32
        $region31: #{tpu_custom_call.1} parent=23 // pred_region
          %s209 = sand.u32 %s20, 1
          %s210 = scalar_lea.sflag [#allocation6], %s209
          %s211 = sand.u32 %s56, 1
          %s212 = smul.addr %s211, 8
          %s213 = scalar_lea.vmem [#allocation5], %s212
          %s214 = smul.u32 2, %s20
          %s216 = ssub.s32 128, 128
          %217 = vsyncadd %s210, %s216
          %s218 = smul.addr %s214, 64
          %s219 = scalar_lea.hbm %s1, %s218
          %s220 = sshll.u32 %s213, 4
          %s221 = int_to_ptr.vmem [resolvable:$true] %s220
          %226 = dma.hbm_to_vmem [thread:$0]  %s219, 128, %s221, %s210, 64, 64, 4
        $region32: #{tpu_custom_call.1} parent=23 // pred_fallthru
          _
      $region24: #{tpu_custom_call.1} parent=5 // pred_fallthru
        _
      %p227 = scmp.le.s32.totalorder 1, %s20
      %p228 = scmp.lt.s32.totalorder %s20, 3
      %p229 = pnand %p227, %p228
      %p230 = pneg %p229
      // Predicated region
      $region33: #{tpu_custom_call.1} parent=5 // pred_check
        _
      $region34: #{tpu_custom_call.1} parent=5 // pred_check_branch
        %232 = sbr.rel (%p229) target = $region36
      $region35: #{tpu_custom_call.1} parent=5 // pred_region
        %s233 = ssub.s32 %s20, 1
        %s234 = sand.u32 %s33, 1
        %s235 = scalar_lea.sflag [#allocation3], %s234
        %s236 = sand.u32 %s33, 1
        %s237 = smul.addr %s236, 8
        %s238 = scalar_lea.vmem [#allocation2], %s237
        // Predicated region
        $region37: #{tpu_custom_call.1} parent=35 // pred_check
          %p239 = pneg %p46
        $region38: #{tpu_custom_call.1} parent=35 // pred_check_branch
          %241 = sbr.rel (%p239) target = $region40
        $region39: #{tpu_custom_call.1} parent=35 // pred_region
          %242 = dma.done %s235, 128
        $region40: #{tpu_custom_call.1} parent=35 // pred_fallthru
          _
        %s243 = sand.u32 %s25, 1
        %s244 = scalar_lea.sflag [#allocation6], %s243
        %s245 = sand.u32 %s59, 1
        %s246 = smul.addr %s245, 8
        %s247 = scalar_lea.vmem [#allocation5], %s246
        // Predicated region
        $region41: #{tpu_custom_call.1} parent=35 // pred_check
          %p248 = pneg %p72
        $region42: #{tpu_custom_call.1} parent=35 // pred_check_branch
          %250 = sbr.rel (%p248) target = $region44
        $region43: #{tpu_custom_call.1} parent=35 // pred_region
          %251 = dma.done %s244, 128
        $region44: #{tpu_custom_call.1} parent=35 // pred_fallthru
          _
        // Predicated region
        $region45: #{tpu_custom_call.1} parent=35 // pred_check
          %p252 = pneg %p93
        $region46: #{tpu_custom_call.1} parent=35 // pred_check_branch
          %254 = sbr.rel (%p252) target = $region48
        $region47: #{tpu_custom_call.1} parent=35 // pred_region
          %255 = dma.done [#allocation6], 3072
        $region48: #{tpu_custom_call.1} parent=35 // pred_fallthru
          _
        // Predicated region
        $region49: #{tpu_custom_call.1} parent=35 // pred_check
          %p256 = pneg %p114
        $region50: #{tpu_custom_call.1} parent=35 // pred_check_branch
          %258 = sbr.rel (%p256) target = $region52
        $region51: #{tpu_custom_call.1} parent=35 // pred_region
          %259 = dma.done [#allocation9], 3072
        $region52: #{tpu_custom_call.1} parent=35 // pred_fallthru
          _
        %s260 = sand.u32 %s33, 1
        %s261 = scalar_lea.sflag [#allocation3], %s260
        %s262 = sand.u32 %s33, 1
        %s263 = smul.addr %s262, 8
        %s264 = scalar_lea.vmem [#allocation2], %s263
        %p265 = pneg %p46
        %p266 = pneg %p43
        %s267 = sand.u32 %s25, 1
        %s268 = scalar_lea.sflag [#allocation6], %s267
        %s269 = sand.u32 %s59, 1
        %s270 = smul.addr %s269, 8
        %s271 = scalar_lea.vmem [#allocation5], %s270
        %p272 = pneg %p72
        %p273 = pneg %p69
        %p274 = pneg %p93
        %p275 = pneg %p90
        %p276 = pneg %p114
        %p277 = pneg %p111
        %p278 = pneg %p140
        %p279 = pneg %p137
        %s280 = sand.u32 %s127, 1
        %s281 = scalar_lea.sflag [#allocation4], %s280
        %s282 = sand.u32 %s127, 1
        %s283 = smul.addr %s282, 16
        %s284 = scalar_lea.vmem [#allocation10], %s283
        %s285 = smul.u32 2, %s25
        %s286 = smul.u32 2, %s25
        %s287 = smul.u32 2, %s25
        %v289 = vld [vmem:[%s238] sm:$0xf]
        %v290 = vld [vmem:[%s238 + $0x4] sm:$0xf]
        %v291 = vld [vmem:[%s247] sm:$0xf]
        %v292 = vld [vmem:[%s247 + $0x4] sm:$0xf]
        %v293 = vunpack.c.l.bf16 %v289
        %v294 = vunpack.c.l.bf16 %v290
        %v295 = vld [vmem:[#allocation7] sm:$0xff]
        %v296 = vld [vmem:[#allocation7 + $0x8] sm:$0xf]
        %v297 = vld [vmem:[#allocation7 + $0xc] sm:$0xff]
        %v298 = vld [vmem:[#allocation7 + $0x14] sm:$0xf]
        %v299 = vld [vmem:[#allocation7 + $0x18] sm:$0xff]
        %v300 = vld [vmem:[#allocation7 + $0x20] sm:$0xf]
        %v301 = vld [vmem:[#allocation7 + $0x24] sm:$0xff]
        %v302 = vld [vmem:[#allocation7 + $0x2c] sm:$0xf]
        %v303 = vld [vmem:[#allocation7 + $0x30] sm:$0xff]
        %v304 = vld [vmem:[#allocation7 + $0x38] sm:$0xf]
        %v305 = vld [vmem:[#allocation7 + $0x3c] sm:$0xff]
        %v306 = vld [vmem:[#allocation7 + $0x44] sm:$0xf]
        %v307 = vld [vmem:[#allocation7 + $0x48] sm:$0xff]
        %v308 = vld [vmem:[#allocation7 + $0x50] sm:$0xf]
        %v309 = vld [vmem:[#allocation7 + $0x54] sm:$0xff]
        %v310 = vld [vmem:[#allocation7 + $0x5c] sm:$0xf]
        %v311 = vld [vmem:[#allocation7 + $0x60] sm:$0xff]
        %v312 = vld [vmem:[#allocation7 + $0x68] sm:$0xf]
        %v313 = vld [vmem:[#allocation7 + $0x6c] sm:$0xff]
        %v314 = vld [vmem:[#allocation7 + $0x74] sm:$0xf]
        %v315 = vld [vmem:[#allocation7 + $0x78] sm:$0xff]
        %v316 = vld [vmem:[#allocation7 + $0x80] sm:$0xf]
        %v317 = vld [vmem:[#allocation7 + $0x84] sm:$0xff]
        %v318 = vld [vmem:[#allocation7 + $0x8c] sm:$0xf]
        %v319 = vld [vmem:[#allocation7 + $0x90] sm:$0xff]
        %v320 = vld [vmem:[#allocation7 + $0x98] sm:$0xf]
        %v321 = vld [vmem:[#allocation7 + $0x9c] sm:$0xff]
        %v322 = vld [vmem:[#allocation7 + $0xa4] sm:$0xf]
        %v323 = vld [vmem:[#allocation7 + $0xa8] sm:$0xff]
        %v324 = vld [vmem:[#allocation7 + $0xb0] sm:$0xf]
        %v325 = vld [vmem:[#allocation7 + $0xb4] sm:$0xff]
        %v326 = vld [vmem:[#allocation7 + $0xbc] sm:$0xf]
        %v329 = vunpack.c.l.b16 %v289
        %v330 = vunpack.c.l.b16 %v290
        %v331 = vpack.c.b16 %v330, %v329
        %v365 = vunpack.c.l.b16 %v295
        %v366 = vunpack.c.h.b16 %v295
        %v367 = vunpack.c.l.b16 %v296
        %v368 = vunpack.c.l.b16 %v297
        %v369 = vunpack.c.h.b16 %v297
        %v370 = vunpack.c.l.b16 %v298
        %v371 = vunpack.c.l.b16 %v299
        %v372 = vunpack.c.h.b16 %v299
        %v373 = vunpack.c.l.b16 %v300
        %v374 = vunpack.c.l.b16 %v301
        %v375 = vunpack.c.h.b16 %v301
        %v376 = vunpack.c.l.b16 %v302
        %v377 = vunpack.c.l.b16 %v303
        %v378 = vunpack.c.h.b16 %v303
        %v379 = vunpack.c.l.b16 %v304
        %v380 = vunpack.c.l.b16 %v305
        %v381 = vunpack.c.h.b16 %v305
        %v382 = vunpack.c.l.b16 %v306
        %v383 = vunpack.c.l.b16 %v307
        %v384 = vunpack.c.h.b16 %v307
        %v385 = vunpack.c.l.b16 %v308
        %v386 = vunpack.c.l.b16 %v309
        %v387 = vunpack.c.h.b16 %v309
        %v388 = vunpack.c.l.b16 %v310
        %v389 = vunpack.c.l.b16 %v311
        %v390 = vunpack.c.h.b16 %v311
        %v391 = vunpack.c.l.b16 %v312
        %v392 = vunpack.c.l.b16 %v313
        %v393 = vunpack.c.h.b16 %v313
        %v394 = vunpack.c.l.b16 %v314
        %v395 = vunpack.c.l.b16 %v315
        %v396 = vunpack.c.h.b16 %v315
        %v397 = vunpack.c.l.b16 %v316
        %v398 = vunpack.c.l.b16 %v317
        %v399 = vunpack.c.h.b16 %v317
        %v400 = vunpack.c.l.b16 %v318
        %v401 = vunpack.c.l.b16 %v319
        %v402 = vunpack.c.h.b16 %v319
        %v403 = vunpack.c.l.b16 %v320
        %v404 = vunpack.c.l.b16 %v321
        %v405 = vunpack.c.h.b16 %v321
        %v406 = vunpack.c.l.b16 %v322
        %v407 = vunpack.c.l.b16 %v323
        %v408 = vunpack.c.h.b16 %v323
        %v409 = vunpack.c.l.b16 %v324
        %v410 = vunpack.c.l.b16 %v325
        %v411 = vunpack.c.h.b16 %v325
        %v412 = vunpack.c.l.b16 %v326
        %v413 = vpack.c.b16 %v368, %v365
        %v414 = vpack.c.b16 %v369, %v366
        %v415 = vpack.c.b16 %v370, %v367
        %v416 = vpack.c.b16 %v374, %v371
        %v417 = vpack.c.b16 %v375, %v372
        %v418 = vpack.c.b16 %v376, %v373
        %v419 = vpack.c.b16 %v380, %v377
        %v420 = vpack.c.b16 %v381, %v378
        %v421 = vpack.c.b16 %v382, %v379
        %v422 = vpack.c.b16 %v386, %v383
        %v423 = vpack.c.b16 %v387, %v384
        %v424 = vpack.c.b16 %v388, %v385
        %v425 = vpack.c.b16 %v392, %v389
        %v426 = vpack.c.b16 %v393, %v390
        %v427 = vpack.c.b16 %v394, %v391
        %v428 = vpack.c.b16 %v398, %v395
        %v429 = vpack.c.b16 %v399, %v396
        %v430 = vpack.c.b16 %v400, %v397
        %v431 = vpack.c.b16 %v404, %v401
        %v432 = vpack.c.b16 %v405, %v402
        %v433 = vpack.c.b16 %v406, %v403
        %v434 = vpack.c.b16 %v410, %v407
        %v435 = vpack.c.b16 %v411, %v408
        %v436 = vpack.c.b16 %v412, %v409
        %461 = vmatprep.subr.bf16.mxu0 %v435
        %462 = vmatpush1.bf16.msra.mxu0 %v434
        %463 = vmatprep.subr.bf16.mxu0 %v432
        %464 = vmatpush1.bf16.msra.mxu0 %v431
        %465 = vmatprep.subr.bf16.mxu0 %v429
        %466 = vmatpush1.bf16.msra.mxu0 %v428
        %467 = vmatprep.subr.bf16.mxu0 %v426
        %468 = vmatpush1.bf16.msra.mxu0 %v425
        %469 = vmatprep.subr.bf16.mxu0 %v423
        %470 = vmatpush1.bf16.msra.mxu0 %v422
        %471 = vmatprep.subr.bf16.mxu0 %v420
        %472 = vmatpush1.bf16.msra.mxu0 %v419
        %473 = vmatprep.subr.bf16.mxu0 %v417
        %474 = vmatpush1.bf16.msra.mxu0 %v416
        %475 = vmatprep.subr.bf16.mxu0 %v414
        %476 = vmatpush1.bf16.msra.mxu0 %v413
        %477 = vmatprep.subr.bf16.mxu0 0
        %478 = vmatpush2.bf16.msra.mxu0 0
        %479 = vmatprep.subr.bf16.mxu0 0
        %480 = vmatpush2.bf16.msra.mxu0 0
        %481 = vmatprep.subr.bf16.mxu0 0
        %482 = vmatpush2.bf16.msra.mxu0 0
        %483 = vmatprep.subr.bf16.mxu0 0
        %484 = vmatpush2.bf16.msra.mxu0 0
        %485 = vmatprep.subr.bf16.mxu0 0
        %486 = vmatpush2.bf16.msra.mxu0 0
        %487 = vmatprep.subr.bf16.mxu0 0
        %488 = vmatpush2.bf16.msra.mxu0 0
        %489 = vmatprep.subr.bf16.mxu0 0
        %490 = vmatpush2.bf16.msra.mxu0 0
        %491 = vmatprep.subr.bf16.mxu0 0
        %492 = vmatpush2.bf16.msra.mxu0 0
        %493 = vmatprep.mubr.bf16.mxu0 0
        %494 = vmatmul.mubr.bf16.gmra.mxu0 %v331
        %v495 = vpop.f32.mrf.mxu0
        %v496 = vadd.f32 0.0, %v495
        %v497 = vpop.f32.mrf.mxu0
        %v498 = vadd.f32 0.0, %v497
        %v499 = vpop.f32.mrf.mxu0
        %v500 = vadd.f32 0.0, %v499
        %v501 = vpop.f32.mrf.mxu0
        %v502 = vadd.f32 0.0, %v501
        %503 = vdwg.mxu0
        %504 = vmatprep.subr.bf16.mxu0 0
        %505 = vmatpush1.bf16.msra.mxu0 %v436
        %506 = vmatprep.subr.bf16.mxu0 0
        %507 = vmatpush1.bf16.msra.mxu0 %v433
        %508 = vmatprep.subr.bf16.mxu0 0
        %509 = vmatpush1.bf16.msra.mxu0 %v430
        %510 = vmatprep.subr.bf16.mxu0 0
        %511 = vmatpush1.bf16.msra.mxu0 %v427
        %512 = vmatprep.subr.bf16.mxu0 0
        %513 = vmatpush1.bf16.msra.mxu0 %v424
        %514 = vmatprep.subr.bf16.mxu0 0
        %515 = vmatpush1.bf16.msra.mxu0 %v421
        %516 = vmatprep.subr.bf16.mxu0 0
        %517 = vmatpush1.bf16.msra.mxu0 %v418
        %518 = vmatprep.subr.bf16.mxu0 0
        %519 = vmatpush1.bf16.msra.mxu0 %v415
        %520 = vmatprep.subr.bf16.mxu0 0
        %521 = vmatpush2.bf16.msra.mxu0 0
        %522 = vmatprep.subr.bf16.mxu0 0
        %523 = vmatpush2.bf16.msra.mxu0 0
        %524 = vmatprep.subr.bf16.mxu0 0
        %525 = vmatpush2.bf16.msra.mxu0 0
        %526 = vmatprep.subr.bf16.mxu0 0
        %527 = vmatpush2.bf16.msra.mxu0 0
        %528 = vmatprep.subr.bf16.mxu0 0
        %529 = vmatpush2.bf16.msra.mxu0 0
        %530 = vmatprep.subr.bf16.mxu0 0
        %531 = vmatpush2.bf16.msra.mxu0 0
        %532 = vmatprep.subr.bf16.mxu0 0
        %533 = vmatpush2.bf16.msra.mxu0 0
        %534 = vmatprep.subr.bf16.mxu0 0
        %535 = vmatpush2.bf16.msra.mxu0 0
        %536 = vmatprep.mubr.bf16.mxu0 0
        %537 = vmatmul.mubr.bf16.gmra.mxu0 %v331
        %v538 = vpop.f32.mrf.mxu0
        %v539 = vadd.f32 0.0, %v538
        %v540 = vpop.f32.mrf.mxu0
        %v541 = vpop.f32.mrf.mxu0
        %v542 = vadd.f32 0.0, %v541
        %v543 = vpop.f32.mrf.mxu0
        %544 = vdwg.mxu0
        %v545 = vld [vmem:[#allocation8] sm:$0xff]
        %v546 = vld [vmem:[#allocation8 + $0x8] sm:$0xf]
        %v547 = vld [vmem:[#allocation8 + $0xc] sm:$0xff]
        %v548 = vld [vmem:[#allocation8 + $0x14] sm:$0xf]
        %v549 = vld [vmem:[#allocation8 + $0x18] sm:$0xff]
        %v550 = vld [vmem:[#allocation8 + $0x20] sm:$0xf]
        %v551 = vld [vmem:[#allocation8 + $0x24] sm:$0xff]
        %v552 = vld [vmem:[#allocation8 + $0x2c] sm:$0xf]
        %v553 = vld [vmem:[#allocation8 + $0x30] sm:$0xff]
        %v554 = vld [vmem:[#allocation8 + $0x38] sm:$0xf]
        %v555 = vld [vmem:[#allocation8 + $0x3c] sm:$0xff]
        %v556 = vld [vmem:[#allocation8 + $0x44] sm:$0xf]
        %v557 = vld [vmem:[#allocation8 + $0x48] sm:$0xff]
        %v558 = vld [vmem:[#allocation8 + $0x50] sm:$0xf]
        %v559 = vld [vmem:[#allocation8 + $0x54] sm:$0xff]
        %v560 = vld [vmem:[#allocation8 + $0x5c] sm:$0xf]
        %v561 = vld [vmem:[#allocation8 + $0x60] sm:$0xff]
        %v562 = vld [vmem:[#allocation8 + $0x68] sm:$0xf]
        %v563 = vld [vmem:[#allocation8 + $0x6c] sm:$0xff]
        %v564 = vld [vmem:[#allocation8 + $0x74] sm:$0xf]
        %v565 = vld [vmem:[#allocation8 + $0x78] sm:$0xff]
        %v566 = vld [vmem:[#allocation8 + $0x80] sm:$0xf]
        %v567 = vld [vmem:[#allocation8 + $0x84] sm:$0xff]
        %v568 = vld [vmem:[#allocation8 + $0x8c] sm:$0xf]
        %v569 = vld [vmem:[#allocation8 + $0x90] sm:$0xff]
        %v570 = vld [vmem:[#allocation8 + $0x98] sm:$0xf]
        %v571 = vld [vmem:[#allocation8 + $0x9c] sm:$0xff]
        %v572 = vld [vmem:[#allocation8 + $0xa4] sm:$0xf]
        %v573 = vld [vmem:[#allocation8 + $0xa8] sm:$0xff]
        %v574 = vld [vmem:[#allocation8 + $0xb0] sm:$0xf]
        %v575 = vld [vmem:[#allocation8 + $0xb4] sm:$0xff]
        %v576 = vld [vmem:[#allocation8 + $0xbc] sm:$0xf]
        %v579 = vunpack.c.l.b16 %v291
        %v580 = vunpack.c.l.b16 %v292
        %v581 = vpack.c.b16 %v580, %v579
        %v615 = vunpack.c.l.b16 %v545
        %v616 = vunpack.c.h.b16 %v545
        %v617 = vunpack.c.l.b16 %v546
        %v618 = vunpack.c.l.b16 %v547
        %v619 = vunpack.c.h.b16 %v547
        %v620 = vunpack.c.l.b16 %v548
        %v621 = vunpack.c.l.b16 %v549
        %v622 = vunpack.c.h.b16 %v549
        %v623 = vunpack.c.l.b16 %v550
        %v624 = vunpack.c.l.b16 %v551
        %v625 = vunpack.c.h.b16 %v551
        %v626 = vunpack.c.l.b16 %v552
        %v627 = vunpack.c.l.b16 %v553
        %v628 = vunpack.c.h.b16 %v553
        %v629 = vunpack.c.l.b16 %v554
        %v630 = vunpack.c.l.b16 %v555
        %v631 = vunpack.c.h.b16 %v555
        %v632 = vunpack.c.l.b16 %v556
        %v633 = vunpack.c.l.b16 %v557
        %v634 = vunpack.c.h.b16 %v557
        %v635 = vunpack.c.l.b16 %v558
        %v636 = vunpack.c.l.b16 %v559
        %v637 = vunpack.c.h.b16 %v559
        %v638 = vunpack.c.l.b16 %v560
        %v639 = vunpack.c.l.b16 %v561
        %v640 = vunpack.c.h.b16 %v561
        %v641 = vunpack.c.l.b16 %v562
        %v642 = vunpack.c.l.b16 %v563
        %v643 = vunpack.c.h.b16 %v563
        %v644 = vunpack.c.l.b16 %v564
        %v645 = vunpack.c.l.b16 %v565
        %v646 = vunpack.c.h.b16 %v565
        %v647 = vunpack.c.l.b16 %v566
        %v648 = vunpack.c.l.b16 %v567
        %v649 = vunpack.c.h.b16 %v567
        %v650 = vunpack.c.l.b16 %v568
        %v651 = vunpack.c.l.b16 %v569
        %v652 = vunpack.c.h.b16 %v569
        %v653 = vunpack.c.l.b16 %v570
        %v654 = vunpack.c.l.b16 %v571
        %v655 = vunpack.c.h.b16 %v571
        %v656 = vunpack.c.l.b16 %v572
        %v657 = vunpack.c.l.b16 %v573
        %v658 = vunpack.c.h.b16 %v573
        %v659 = vunpack.c.l.b16 %v574
        %v660 = vunpack.c.l.b16 %v575
        %v661 = vunpack.c.h.b16 %v575
        %v662 = vunpack.c.l.b16 %v576
        %v663 = vpack.c.b16 %v618, %v615
        %v664 = vpack.c.b16 %v619, %v616
        %v665 = vpack.c.b16 %v620, %v617
        %v666 = vpack.c.b16 %v624, %v621
        %v667 = vpack.c.b16 %v625, %v622
        %v668 = vpack.c.b16 %v626, %v623
        %v669 = vpack.c.b16 %v630, %v627
        %v670 = vpack.c.b16 %v631, %v628
        %v671 = vpack.c.b16 %v632, %v629
        %v672 = vpack.c.b16 %v636, %v633
        %v673 = vpack.c.b16 %v637, %v634
        %v674 = vpack.c.b16 %v638, %v635
        %v675 = vpack.c.b16 %v642, %v639
        %v676 = vpack.c.b16 %v643, %v640
        %v677 = vpack.c.b16 %v644, %v641
        %v678 = vpack.c.b16 %v648, %v645
        %v679 = vpack.c.b16 %v649, %v646
        %v680 = vpack.c.b16 %v650, %v647
        %v681 = vpack.c.b16 %v654, %v651
        %v682 = vpack.c.b16 %v655, %v652
        %v683 = vpack.c.b16 %v656, %v653
        %v684 = vpack.c.b16 %v660, %v657
        %v685 = vpack.c.b16 %v661, %v658
        %v686 = vpack.c.b16 %v662, %v659
        %711 = vmatprep.subr.bf16.mxu0 %v685
        %712 = vmatpush1.bf16.msra.mxu0 %v684
        %713 = vmatprep.subr.bf16.mxu0 %v682
        %714 = vmatpush1.bf16.msra.mxu0 %v681
        %715 = vmatprep.subr.bf16.mxu0 %v679
        %716 = vmatpush1.bf16.msra.mxu0 %v678
        %717 = vmatprep.subr.bf16.mxu0 %v676
        %718 = vmatpush1.bf16.msra.mxu0 %v675
        %719 = vmatprep.subr.bf16.mxu0 %v673
        %720 = vmatpush1.bf16.msra.mxu0 %v672
        %721 = vmatprep.subr.bf16.mxu0 %v670
        %722 = vmatpush1.bf16.msra.mxu0 %v669
        %723 = vmatprep.subr.bf16.mxu0 %v667
        %724 = vmatpush1.bf16.msra.mxu0 %v666
        %725 = vmatprep.subr.bf16.mxu0 %v664
        %726 = vmatpush1.bf16.msra.mxu0 %v663
        %727 = vmatprep.subr.bf16.mxu0 0
        %728 = vmatpush2.bf16.msra.mxu0 0
        %729 = vmatprep.subr.bf16.mxu0 0
        %730 = vmatpush2.bf16.msra.mxu0 0
        %731 = vmatprep.subr.bf16.mxu0 0
        %732 = vmatpush2.bf16.msra.mxu0 0
        %733 = vmatprep.subr.bf16.mxu0 0
        %734 = vmatpush2.bf16.msra.mxu0 0
        %735 = vmatprep.subr.bf16.mxu0 0
        %736 = vmatpush2.bf16.msra.mxu0 0
        %737 = vmatprep.subr.bf16.mxu0 0
        %738 = vmatpush2.bf16.msra.mxu0 0
        %739 = vmatprep.subr.bf16.mxu0 0
        %740 = vmatpush2.bf16.msra.mxu0 0
        %741 = vmatprep.subr.bf16.mxu0 0
        %742 = vmatpush2.bf16.msra.mxu0 0
        %743 = vmatprep.mubr.bf16.mxu0 0
        %744 = vmatmul.mubr.bf16.gmra.mxu0 %v581
        %v745 = vpop.f32.mrf.mxu0
        %v746 = vadd.f32 0.0, %v745
        %v747 = vpop.f32.mrf.mxu0
        %v748 = vadd.f32 0.0, %v747
        %v749 = vpop.f32.mrf.mxu0
        %v750 = vadd.f32 0.0, %v749
        %v751 = vpop.f32.mrf.mxu0
        %v752 = vadd.f32 0.0, %v751
        %753 = vdwg.mxu0
        %754 = vmatprep.subr.bf16.mxu0 0
        %755 = vmatpush1.bf16.msra.mxu0 %v686
        %756 = vmatprep.subr.bf16.mxu0 0
        %757 = vmatpush1.bf16.msra.mxu0 %v683
        %758 = vmatprep.subr.bf16.mxu0 0
        %759 = vmatpush1.bf16.msra.mxu0 %v680
        %760 = vmatprep.subr.bf16.mxu0 0
        %761 = vmatpush1.bf16.msra.mxu0 %v677
        %762 = vmatprep.subr.bf16.mxu0 0
        %763 = vmatpush1.bf16.msra.mxu0 %v674
        %764 = vmatprep.subr.bf16.mxu0 0
        %765 = vmatpush1.bf16.msra.mxu0 %v671
        %766 = vmatprep.subr.bf16.mxu0 0
        %767 = vmatpush1.bf16.msra.mxu0 %v668
        %768 = vmatprep.subr.bf16.mxu0 0
        %769 = vmatpush1.bf16.msra.mxu0 %v665
        %770 = vmatprep.subr.bf16.mxu0 0
        %771 = vmatpush2.bf16.msra.mxu0 0
        %772 = vmatprep.subr.bf16.mxu0 0
        %773 = vmatpush2.bf16.msra.mxu0 0
        %774 = vmatprep.subr.bf16.mxu0 0
        %775 = vmatpush2.bf16.msra.mxu0 0
        %776 = vmatprep.subr.bf16.mxu0 0
        %777 = vmatpush2.bf16.msra.mxu0 0
        %778 = vmatprep.subr.bf16.mxu0 0
        %779 = vmatpush2.bf16.msra.mxu0 0
        %780 = vmatprep.subr.bf16.mxu0 0
        %781 = vmatpush2.bf16.msra.mxu0 0
        %782 = vmatprep.subr.bf16.mxu0 0
        %783 = vmatpush2.bf16.msra.mxu0 0
        %784 = vmatprep.subr.bf16.mxu0 0
        %785 = vmatpush2.bf16.msra.mxu0 0
        %786 = vmatprep.mubr.bf16.mxu0 0
        %787 = vmatmul.mubr.bf16.gmra.mxu0 %v581
        %v788 = vpop.f32.mrf.mxu0
        %v789 = vadd.f32 0.0, %v788
        %v790 = vpop.f32.mrf.mxu0
        %v791 = vpop.f32.mrf.mxu0
        %v792 = vadd.f32 0.0, %v791
        %v793 = vpop.f32.mrf.mxu0
        %794 = vdwg.mxu0
        %v795 = vadd.f32 %v496, %v746
        %v796 = vadd.f32 %v500, %v750
        %v797 = vxor.u32 %v795, 2147483648
        %v798 = vxor.u32 %v796, 2147483648
        %v799 = vmul.f32 %v797, 1.442695
        %v800 = vpow.pop %v799
        %v801 = vmul.f32 %v798, 1.442695
        %v802 = vpow.pop %v801
        %v803 = vadd.f32 %v800, 1.0
        %v804 = vadd.f32 %v802, 1.0
        %v805 = vrcp.pop %v803
        %v806 = vmul.f32 1.0, %v805
        %v807 = vrcp.pop %v804
        %v808 = vmul.f32 1.0, %v807
        %v809 = vadd.f32 %v498, %v748
        %v810 = vadd.f32 %v502, %v752
        %v811 = vxor.u32 %v809, 2147483648
        %v812 = vxor.u32 %v810, 2147483648
        %v813 = vmul.f32 %v811, 1.442695
        %v814 = vpow.pop %v813
        %v815 = vmul.f32 %v812, 1.442695
        %v816 = vpow.pop %v815
        %v817 = vadd.f32 %v814, 1.0
        %v818 = vadd.f32 %v816, 1.0
        %v819 = vrcp.pop %v817
        %v820 = vmul.f32 1.0, %v819
        %v821 = vrcp.pop %v818
        %v822 = vmul.f32 1.0, %v821
        %v823 = vmul.f32 %v820, %v789
        %v824 = vmul.f32 %v822, %v792
        %v825 = vadd.f32 %v539, %v823
        %v826 = vadd.f32 %v542, %v824
        %v827 = vtanh.pop %v825
        %v828 = vtanh.pop %v826
        %v829 = vsub.f32 1.0, %v806
        %v830 = vsub.f32 1.0, %v808
        %v831 = vmul.f32 %v829, %v293
        %v832 = vmul.f32 %v830, %v294
        %v833 = vmul.f32 %v806, %v827
        %v834 = vmul.f32 %v808, %v828
        %v835 = vadd.f32 %v831, %v833
        %v836 = vadd.f32 %v832, %v834
        %837 = vst [vmem:[%s284] sm:$0xff] %v835
        %838 = vst [vmem:[%s284 + $0x8] sm:$0xff] %v836
        %s839 = sand.u32 %s127, 1
        %s840 = scalar_lea.sflag [#allocation4], %s839
        %s841 = sand.u32 %s127, 1
        %s842 = smul.addr %s841, 16
        %s843 = scalar_lea.vmem [#allocation10], %s842
        // Predicated region
        $region53: #{tpu_custom_call.1} parent=35 // pred_check
          %p844 = pneg %p137
        $region54: #{tpu_custom_call.1} parent=35 // pred_check_branch
          %846 = sbr.rel (%p844) target = $region56
        $region55: #{tpu_custom_call.1} parent=35 // pred_region
          %s847 = smul.u32 2, %s25
          %s849 = ssub.s32 256, 256
          %850 = vsyncadd %s840, %s849
          %s851 = smul.addr %s847, 128
          %s852 = scalar_lea.hbm %s4, %s851
          %s853 = sshll.u32 %s843, 4
          %s854 = int_to_ptr.vmem [resolvable:$true] %s853
          %859 = dma.vmem_to_hbm [thread:$0]  %s854, 256, %s852, %s840, 128, 128, 8
        $region56: #{tpu_custom_call.1} parent=35 // pred_fallthru
          _
      $region36: #{tpu_custom_call.1} parent=5 // pred_fallthru
        _
      %p860 = scmp.le.s32.totalorder 2, %s20
      // Predicated region
      $region57: #{tpu_custom_call.1} parent=5 // pred_check
        %p861 = pneg %p860
      $region58: #{tpu_custom_call.1} parent=5 // pred_check_branch
        %863 = sbr.rel (%p861) target = $region60
      $region59: #{tpu_custom_call.1} parent=5 // pred_region
        %s864 = ssub.s32 %s20, 2
        // Predicated region
        $region61: #{tpu_custom_call.1} parent=59 // pred_check
          %p865 = pneg %p143
        $region62: #{tpu_custom_call.1} parent=59 // pred_check_branch
          %867 = sbr.rel (%p865) target = $region64
        $region63: #{tpu_custom_call.1} parent=59 // pred_region
          %s868 = sand.u32 %s128, 1
          %s869 = scalar_lea.sflag [#allocation4], %s868
          %s870 = sand.u32 %s128, 1
          %s871 = smul.addr %s870, 16
          %s872 = scalar_lea.vmem [#allocation10], %s871
          %873 = dma.done %s869, 256
        $region64: #{tpu_custom_call.1} parent=59 // pred_fallthru
          _
      $region60: #{tpu_custom_call.1} parent=5 // pred_fallthru
        _
    $region6: #{tpu_custom_call.1} parent=1 // loop_footer
      %s24 = sadd.s32 1, %s20
    $region7: #{tpu_custom_call.1} parent=1 // loop_footer_branch
      %19 = sbr.rel target = $region3
    $region8: #{tpu_custom_call.1} parent=1 // loop_exit
      _
    %874 = vsyncpa [#allocation3], 1
    %s875 = scalar_lea.sflag [#allocation3], 1
    %876 = vsyncpa %s875, 1
    %877 = vsyncpa [#allocation6], 1
    %s878 = scalar_lea.sflag [#allocation6], 1
    %879 = vsyncpa %s878, 1
    %880 = vsyncpa [#allocation9], 1
    %881 = vsyncpa [#allocation4], 1
    %s882 = scalar_lea.sflag [#allocation4], 1
    %883 = vsyncpa %s882, 1

// kernel: tpu_custom_call.1
$region0: #{tpu_custom_call.1}
  #allocation0 [shape = 'u32[]', space=smem, size = 0x4, offset = 0x4, fixed_abs, tag = 'smem constant byte address 0x4 - core index']
  #allocation1 [shape = 'u32[144,128]{1,0:T(1,128)}', space=vmem, size = 0x12000, scoped, tag = 'internal scratch']
  %s0 = inlined_call_operand.hbm [shape: bf16[32,128], index: 0, kind: input, shape index: {}]
  %s1 = inlined_call_operand.hbm [shape: bf16[32,128], index: 1, kind: input, shape index: {}]
  %s2 = inlined_call_operand.hbm [shape: bf16[128,384], index: 2, kind: input, shape index: {}]
  %s3 = inlined_call_operand.hbm [shape: bf16[128,384], index: 3, kind: input, shape index: {}]
  %s4 = inlined_call_operand.hbm [shape: f32[32,128], index: 4, kind: output, shape index: {}]
  %s5 = sld [smem:[#allocation0]]
  $region65: #{tpu_custom_call.1} parent=0
    _
  %s7 = ssub.s32 1, %s5
  %s8 = scalar_select 0, %s7, %s5
  $region1: #{tpu_custom_call.1} parent=0
    #allocation2 [shape = 'u8[8192]{0}', space=vmem, size = 0x2000, scoped, tag = 'input window, operand 0']
    #allocation3 [shape = 's32[2]{0}', space=sflag, size = 0x8, scoped, tag = 'scoped memory for tpu_custom_call.1']
    #allocation4 [shape = 's32[2]{0}', space=sflag, size = 0x8, scoped, tag = 'scoped memory for tpu_custom_call.1']
    #allocation5 [shape = 'u8[8192]{0}', space=vmem, size = 0x2000, scoped, tag = 'input window, operand 1']
    #allocation6 [shape = 's32[2]{0}', space=sflag, size = 0x8, scoped, tag = 'scoped memory for tpu_custom_call.1']
    #allocation7 [shape = 'u8[98304]{0}', space=vmem, size = 0x18000, scoped, tag = 'input window, operand 2, single buffered']
    #allocation8 [shape = 'u8[98304]{0}', space=vmem, size = 0x18000, scoped, tag = 'input window, operand 3, single buffered']
    #allocation9 [shape = 's32[1]{0}', space=sflag, size = 0x4, scoped, tag = 'scoped memory for tpu_custom_call.1']
    #allocation10 [shape = 'u8[16384]{0}', space=vmem, size = 0x4000, scoped, tag = 'output window, operand 0']
    %9 = vsyncpa [#allocation3], 0
    %s10 = scalar_lea.sflag [#allocation3], 1
    %11 = vsyncpa %s10, 0
    %12 = vsyncpa [#allocation6], 0
    %s13 = scalar_lea.sflag [#allocation6], 1
    %14 = vsyncpa %s13, 0
    %15 = vsyncpa [#allocation9], 0
    %16 = vsyncpa [#allocation4], 0
    %s17 = scalar_lea.sflag [#allocation4], 1
    %18 = vsyncpa %s17, 0
    loop: start=0, step=1, limit=4
    $region2: #{tpu_custom_call.1} parent=1 // loop_pre_header
      _
    $region3: #{tpu_custom_call.1} parent=1 // loop_header
      %s20 = sphi 0, %s24
      %p21 = scmp.ge.s32.totalorder %s20, 4
      %s30 = sphi 0, %s32
      %s33 = sphi 0, %s30
      %s34 = sphi 0, %s33
      %s50 = sphi 0, %s34
      %s56 = sphi 0, %s58
      %s59 = sphi 0, %s56
      %s60 = sphi 0, %s59
      %s76 = sphi 0, %s60
      %s80 = sphi 0, %s80
      %s82 = sphi 0, %s80
      %s83 = sphi 0, %s82
      %s97 = sphi 0, %s83
      %s101 = sphi 0, %s101
      %s103 = sphi 0, %s101
      %s104 = sphi 0, %s103
      %s118 = sphi 0, %s104
      %s124 = sphi 0, %s126
      %s127 = sphi 0, %s124
      %s128 = sphi 0, %s127
      %s144 = sphi 0, %s128
    $region4: #{tpu_custom_call.1} parent=1 // loop_header_branch
      %23 = sbr.rel (%p21) target = $region8
    $region5: #{tpu_custom_call.1} parent=1 // loop_body
      %s25 = ssub.s32 %s20, 1
      %s26 = ssub.s32 %s20, 2
      %s27 = sadd.s32 %s20, 1
      %s28 = ssub.s32 %s20, %s27
      %p29 = scmp.eq.s32.totalorder %s28, 0
      %s31 = sadd.s32 %s30, 1
      %s32 = scalar_select %p29, %s30, %s31
      %p35 = pneg %p29
      %p36 = scmp.eq.s32.totalorder %s20, 1
      %p37 = por %p35, %p36
      %p38 = scmp.ne.s32.totalorder %s30, %s33
      %p39 = scmp.eq.s32.totalorder %s20, 0
      %p40 = por %p38, %p39
      %p41 = scmp.ne.s32.totalorder %s30, %s33
      %p42 = scmp.eq.s32.totalorder %s25, 1
      %p43 = por %p41, %p42
      %p44 = scmp.ne.s32.totalorder %s33, %s34
      %p45 = scmp.eq.s32.totalorder %s25, 0
      %p46 = por %p44, %p45
      %p47 = scmp.ne.s32.totalorder %s33, %s34
      %p48 = scmp.eq.s32.totalorder %s26, 1
      %p49 = por %p47, %p48
      %p51 = scmp.ne.s32.totalorder %s34, %s50
      %p52 = scmp.eq.s32.totalorder %s26, 0
      %p53 = por %p51, %p52
      %s54 = ssub.s32 %s20, %s27
      %p55 = scmp.eq.s32.totalorder %s54, 0
      %s57 = sadd.s32 %s56, 1
      %s58 = scalar_select %p55, %s56, %s57
      %p61 = pneg %p55
      %p62 = scmp.eq.s32.totalorder %s20, 1
      %p63 = por %p61, %p62
      %p64 = scmp.ne.s32.totalorder %s56, %s59
      %p65 = scmp.eq.s32.totalorder %s20, 0
      %p66 = por %p64, %p65
      %p67 = scmp.ne.s32.totalorder %s56, %s59
      %p68 = scmp.eq.s32.totalorder %s25, 1
      %p69 = por %p67, %p68
      %p70 = scmp.ne.s32.totalorder %s59, %s60
      %p71 = scmp.eq.s32.totalorder %s25, 0
      %p72 = por %p70, %p71
      %p73 = scmp.ne.s32.totalorder %s59, %s60
      %p74 = scmp.eq.s32.totalorder %s26, 1
      %p75 = por %p73, %p74
      %p77 = scmp.ne.s32.totalorder %s60, %s76
      %p78 = scmp.eq.s32.totalorder %s26, 0
      %p79 = por %p77, %p78
      %s81 = sadd.s32 %s80, 1
      %p84 = scmp.eq.s32.totalorder %s20, 1
      %p85 = scmp.ne.s32.totalorder %s80, %s82
      %p86 = scmp.eq.s32.totalorder %s20, 0
      %p87 = por %p85, %p86
      %p88 = scmp.ne.s32.totalorder %s80, %s82
      %p89 = scmp.eq.s32.totalorder %s25, 1
      %p90 = por %p88, %p89
      %p91 = scmp.ne.s32.totalorder %s82, %s83
      %p92 = scmp.eq.s32.totalorder %s25, 0
      %p93 = por %p91, %p92
      %p94 = scmp.ne.s32.totalorder %s82, %s83
      %p95 = scmp.eq.s32.totalorder %s26, 1
      %p96 = por %p94, %p95
      %p98 = scmp.ne.s32.totalorder %s83, %s97
      %p99 = scmp.eq.s32.totalorder %s26, 0
      %p100 = por %p98, %p99
      %s102 = sadd.s32 %s101, 1
      %p105 = scmp.eq.s32.totalorder %s20, 1
      %p106 = scmp.ne.s32.totalorder %s101, %s103
      %p107 = scmp.eq.s32.totalorder %s20, 0
      %p108 = por %p106, %p107
      %p109 = scmp.ne.s32.totalorder %s101, %s103
      %p110 = scmp.eq.s32.totalorder %s25, 1
      %p111 = por %p109, %p110
      %p112 = scmp.ne.s32.totalorder %s103, %s104
      %p113 = scmp.eq.s32.totalorder %s25, 0
      %p114 = por %p112, %p113
      %p115 = scmp.ne.s32.totalorder %s103, %s104
      %p116 = scmp.eq.s32.totalorder %s26, 1
      %p117 = por %p115, %p116
      %p119 = scmp.ne.s32.totalorder %s104, %s118
      %p120 = scmp.eq.s32.totalorder %s26, 0
      %p121 = por %p119, %p120
      %s122 = ssub.s32 %s20, %s27
      %p123 = scmp.eq.s32.totalorder %s122, 0
      %s125 = sadd.s32 %s124, 1
      %s126 = scalar_select %p123, %s124, %s125
      %p129 = pneg %p123
      %p130 = scmp.eq.s32.totalorder %s20, 1
      %p131 = por %p129, %p130
      %p132 = scmp.ne.s32.totalorder %s124, %s127
      %p133 = scmp.eq.s32.totalorder %s20, 0
      %p134 = por %p132, %p133
      %p135 = scmp.ne.s32.totalorder %s124, %s127
      %p136 = scmp.eq.s32.totalorder %s25, 1
      %p137 = por %p135, %p136
      %p138 = scmp.ne.s32.totalorder %s127, %s128
      %p139 = scmp.eq.s32.totalorder %s25, 0
      %p140 = por %p138, %p139
      %p141 = scmp.ne.s32.totalorder %s127, %s128
      %p142 = scmp.eq.s32.totalorder %s26, 1
      %p143 = por %p141, %p142
      %p145 = scmp.ne.s32.totalorder %s128, %s144
      %p146 = scmp.eq.s32.totalorder %s26, 0
      %p147 = por %p145, %p146
      %p148 = scmp.le.s32.totalorder 1, %s20
      %p149 = scmp.lt.s32.totalorder %s20, 3
      %p150 = pnand %p148, %p149
      %p151 = pneg %p150
      // Predicated region
      $region9: #{tpu_custom_call.1} parent=5 // pred_check
        _
      $region10: #{tpu_custom_call.1} parent=5 // pred_check_branch
        %153 = sbr.rel (%p150) target = $region12
      $region11: #{tpu_custom_call.1} parent=5 // pred_region
        %s154 = ssub.s32 %s20, 1
        // Predicated region
        $region13: #{tpu_custom_call.1} parent=11 // pred_check
          %p155 = pneg %p93
        $region14: #{tpu_custom_call.1} parent=11 // pred_check_branch
          %157 = sbr.rel (%p155) target = $region16
        $region15: #{tpu_custom_call.1} parent=11 // pred_region
          %s159 = ssub.s32 3072, 3072
          %160 = vsyncadd [#allocation6], %s159
          %s161 = sshll.u32 [#allocation7], 4
          %s162 = int_to_ptr.vmem [resolvable:$true] %s161
          %167 = dma.hbm_to_vmem [thread:$0]  %s2, 3072, %s162, [#allocation6], 192, 192, 12
        $region16: #{tpu_custom_call.1} parent=11 // pred_fallthru
          _
        // Predicated region
        $region17: #{tpu_custom_call.1} parent=11 // pred_check
          %p168 = pneg %p114
        $region18: #{tpu_custom_call.1} parent=11 // pred_check_branch
          %170 = sbr.rel (%p168) target = $region20
        $region19: #{tpu_custom_call.1} parent=11 // pred_region
          %s172 = ssub.s32 3072, 3072
          %173 = vsyncadd [#allocation9], %s172
          %s174 = sshll.u32 [#allocation8], 4
          %s175 = int_to_ptr.vmem [resolvable:$true] %s174
          %180 = dma.hbm_to_vmem [thread:$0]  %s3, 3072, %s175, [#allocation9], 192, 192, 12
        $region20: #{tpu_custom_call.1} parent=11 // pred_fallthru
          _
      $region12: #{tpu_custom_call.1} parent=5 // pred_fallthru
        _
      %p181 = scmp.lt.s32.totalorder %s20, 2
      // Predicated region
      $region21: #{tpu_custom_call.1} parent=5 // pred_check
        %p182 = pneg %p181
      $region22: #{tpu_custom_call.1} parent=5 // pred_check_branch
        %184 = sbr.rel (%p182) target = $region24
      $region23: #{tpu_custom_call.1} parent=5 // pred_region
        // Predicated region
        $region25: #{tpu_custom_call.1} parent=23 // pred_check
          %p185 = pneg %p40
        $region26: #{tpu_custom_call.1} parent=23 // pred_check_branch
          %187 = sbr.rel (%p185) target = $region28
        $region27: #{tpu_custom_call.1} parent=23 // pred_region
          %s188 = sand.u32 %s30, 1
          %s189 = scalar_lea.sflag [#allocation3], %s188
          %s190 = sand.u32 %s30, 1
          %s191 = smul.addr %s190, 8
          %s192 = scalar_lea.vmem [#allocation2], %s191
          %s193 = smul.u32 2, %s20
          %s195 = ssub.s32 128, 128
          %196 = vsyncadd %s189, %s195
          %s197 = smul.addr %s193, 64
          %s198 = scalar_lea.hbm %s0, %s197
          %s199 = sshll.u32 %s192, 4
          %s200 = int_to_ptr.vmem [resolvable:$true] %s199
          %205 = dma.hbm_to_vmem [thread:$0]  %s198, 128, %s200, %s189, 64, 64, 4
        $region28: #{tpu_custom_call.1} parent=23 // pred_fallthru
          _
        // Predicated region
        $region29: #{tpu_custom_call.1} parent=23 // pred_check
          %p206 = pneg %p66
        $region30: #{tpu_custom_call.1} parent=23 // pred_check_branch
          %208 = sbr.rel (%p206) target = $region32
        $region31: #{tpu_custom_call.1} parent=23 // pred_region
          %s209 = sand.u32 %s20, 1
          %s210 = scalar_lea.sflag [#allocation6], %s209
          %s211 = sand.u32 %s56, 1
          %s212 = smul.addr %s211, 8
          %s213 = scalar_lea.vmem [#allocation5], %s212
          %s214 = smul.u32 2, %s20
          %s216 = ssub.s32 128, 128
          %217 = vsyncadd %s210, %s216
          %s218 = smul.addr %s214, 64
          %s219 = scalar_lea.hbm %s1, %s218
          %s220 = sshll.u32 %s213, 4
          %s221 = int_to_ptr.vmem [resolvable:$true] %s220
          %226 = dma.hbm_to_vmem [thread:$0]  %s219, 128, %s221, %s210, 64, 64, 4
        $region32: #{tpu_custom_call.1} parent=23 // pred_fallthru
          _
      $region24: #{tpu_custom_call.1} parent=5 // pred_fallthru
        _
      %p227 = scmp.le.s32.totalorder 1, %s20
      %p228 = scmp.lt.s32.totalorder %s20, 3
      %p229 = pnand %p227, %p228
      %p230 = pneg %p229
      // Predicated region
      $region33: #{tpu_custom_call.1} parent=5 // pred_check
        _
      $region34: #{tpu_custom_call.1} parent=5 // pred_check_branch
        %232 = sbr.rel (%p229) target = $region36
      $region35: #{tpu_custom_call.1} parent=5 // pred_region
        %s233 = ssub.s32 %s20, 1
        %s234 = sand.u32 %s33, 1
        %s235 = scalar_lea.sflag [#allocation3], %s234
        %s236 = sand.u32 %s33, 1
        %s237 = smul.addr %s236, 8
        %s238 = scalar_lea.vmem [#allocation2], %s237
        // Predicated region
        $region37: #{tpu_custom_call.1} parent=35 // pred_check
          %p239 = pneg %p46
        $region38: #{tpu_custom_call.1} parent=35 // pred_check_branch
          %241 = sbr.rel (%p239) target = $region40
        $region39: #{tpu_custom_call.1} parent=35 // pred_region
          %242 = dma.done %s235, 128
        $region40: #{tpu_custom_call.1} parent=35 // pred_fallthru
          _
        %s243 = sand.u32 %s25, 1
        %s244 = scalar_lea.sflag [#allocation6], %s243
        %s245 = sand.u32 %s59, 1
        %s246 = smul.addr %s245, 8
        %s247 = scalar_lea.vmem [#allocation5], %s246
        // Predicated region
        $region41: #{tpu_custom_call.1} parent=35 // pred_check
          %p248 = pneg %p72
        $region42: #{tpu_custom_call.1} parent=35 // pred_check_branch
          %250 = sbr.rel (%p248) target = $region44
        $region43: #{tpu_custom_call.1} parent=35 // pred_region
          %251 = dma.done %s244, 128
        $region44: #{tpu_custom_call.1} parent=35 // pred_fallthru
          _
        // Predicated region
        $region45: #{tpu_custom_call.1} parent=35 // pred_check
          %p252 = pneg %p93
        $region46: #{tpu_custom_call.1} parent=35 // pred_check_branch
          %254 = sbr.rel (%p252) target = $region48
        $region47: #{tpu_custom_call.1} parent=35 // pred_region
          %255 = dma.done [#allocation6], 3072
        $region48: #{tpu_custom_call.1} parent=35 // pred_fallthru
          _
        // Predicated region
        $region49: #{tpu_custom_call.1} parent=35 // pred_check
          %p256 = pneg %p114
        $region50: #{tpu_custom_call.1} parent=35 // pred_check_branch
          %258 = sbr.rel (%p256) target = $region52
        $region51: #{tpu_custom_call.1} parent=35 // pred_region
          %259 = dma.done [#allocation9], 3072
        $region52: #{tpu_custom_call.1} parent=35 // pred_fallthru
          _
        %s260 = sand.u32 %s33, 1
        %s261 = scalar_lea.sflag [#allocation3], %s260
        %s262 = sand.u32 %s33, 1
        %s263 = smul.addr %s262, 8
        %s264 = scalar_lea.vmem [#allocation2], %s263
        %p265 = pneg %p46
        %p266 = pneg %p43
        %s267 = sand.u32 %s25, 1
        %s268 = scalar_lea.sflag [#allocation6], %s267
        %s269 = sand.u32 %s59, 1
        %s270 = smul.addr %s269, 8
        %s271 = scalar_lea.vmem [#allocation5], %s270
        %p272 = pneg %p72
        %p273 = pneg %p69
        %p274 = pneg %p93
        %p275 = pneg %p90
        %p276 = pneg %p114
        %p277 = pneg %p111
        %p278 = pneg %p140
        %p279 = pneg %p137
        %s280 = sand.u32 %s127, 1
        %s281 = scalar_lea.sflag [#allocation4], %s280
        %s282 = sand.u32 %s127, 1
        %s283 = smul.addr %s282, 16
        %s284 = scalar_lea.vmem [#allocation10], %s283
        %s285 = smul.u32 2, %s25
        %s286 = smul.u32 2, %s25
        %s287 = smul.u32 2, %s25
        %v289 = vld [vmem:[%s238] sm:$0xf]
        %v290 = vld [vmem:[%s238 + $0x4] sm:$0xf]
        %v291 = vld [vmem:[%s247] sm:$0xf]
        %v292 = vld [vmem:[%s247 + $0x4] sm:$0xf]
        %v293 = vunpack.c.l.bf16 %v289
        %v294 = vunpack.c.l.bf16 %v290
        %v295 = vld [vmem:[#allocation7] sm:$0xff]
        %v296 = vld [vmem:[#allocation7 + $0x8] sm:$0xf]
        %v297 = vld [vmem:[#allocation7 + $0xc] sm:$0xff]
        %v298 = vld [vmem:[#allocation7 + $0x14] sm:$0xf]
        %v299 = vld [vmem:[#allocation7 + $0x18] sm:$0xff]
        %v300 = vld [vmem:[#allocation7 + $0x20] sm:$0xf]
        %v301 = vld [vmem:[#allocation7 + $0x24] sm:$0xff]
        %v302 = vld [vmem:[#allocation7 + $0x2c] sm:$0xf]
        %v303 = vld [vmem:[#allocation7 + $0x30] sm:$0xff]
        %v304 = vld [vmem:[#allocation7 + $0x38] sm:$0xf]
        %v305 = vld [vmem:[#allocation7 + $0x3c] sm:$0xff]
        %v306 = vld [vmem:[#allocation7 + $0x44] sm:$0xf]
        %v307 = vld [vmem:[#allocation7 + $0x48] sm:$0xff]
        %v308 = vld [vmem:[#allocation7 + $0x50] sm:$0xf]
        %v309 = vld [vmem:[#allocation7 + $0x54] sm:$0xff]
        %v310 = vld [vmem:[#allocation7 + $0x5c] sm:$0xf]
        %v311 = vld [vmem:[#allocation7 + $0x60] sm:$0xff]
        %v312 = vld [vmem:[#allocation7 + $0x68] sm:$0xf]
        %v313 = vld [vmem:[#allocation7 + $0x6c] sm:$0xff]
        %v314 = vld [vmem:[#allocation7 + $0x74] sm:$0xf]
        %v315 = vld [vmem:[#allocation7 + $0x78] sm:$0xff]
        %v316 = vld [vmem:[#allocation7 + $0x80] sm:$0xf]
        %v317 = vld [vmem:[#allocation7 + $0x84] sm:$0xff]
        %v318 = vld [vmem:[#allocation7 + $0x8c] sm:$0xf]
        %v319 = vld [vmem:[#allocation7 + $0x90] sm:$0xff]
        %v320 = vld [vmem:[#allocation7 + $0x98] sm:$0xf]
        %v321 = vld [vmem:[#allocation7 + $0x9c] sm:$0xff]
        %v322 = vld [vmem:[#allocation7 + $0xa4] sm:$0xf]
        %v323 = vld [vmem:[#allocation7 + $0xa8] sm:$0xff]
        %v324 = vld [vmem:[#allocation7 + $0xb0] sm:$0xf]
        %v325 = vld [vmem:[#allocation7 + $0xb4] sm:$0xff]
        %v326 = vld [vmem:[#allocation7 + $0xbc] sm:$0xf]
        %v329 = vunpack.c.l.b16 %v289
        %v330 = vunpack.c.l.b16 %v290
        %v331 = vpack.c.b16 %v330, %v329
        %v365 = vunpack.c.l.b16 %v295
        %v366 = vunpack.c.h.b16 %v295
        %v367 = vunpack.c.l.b16 %v296
        %v368 = vunpack.c.l.b16 %v297
        %v369 = vunpack.c.h.b16 %v297
        %v370 = vunpack.c.l.b16 %v298
        %v371 = vunpack.c.l.b16 %v299
        %v372 = vunpack.c.h.b16 %v299
        %v373 = vunpack.c.l.b16 %v300
        %v374 = vunpack.c.l.b16 %v301
        %v375 = vunpack.c.h.b16 %v301
        %v376 = vunpack.c.l.b16 %v302
        %v377 = vunpack.c.l.b16 %v303
        %v378 = vunpack.c.h.b16 %v303
        %v379 = vunpack.c.l.b16 %v304
        %v380 = vunpack.c.l.b16 %v305
        %v381 = vunpack.c.h.b16 %v305
        %v382 = vunpack.c.l.b16 %v306
        %v383 = vunpack.c.l.b16 %v307
        %v384 = vunpack.c.h.b16 %v307
        %v385 = vunpack.c.l.b16 %v308
        %v386 = vunpack.c.l.b16 %v309
        %v387 = vunpack.c.h.b16 %v309
        %v388 = vunpack.c.l.b16 %v310
        %v389 = vunpack.c.l.b16 %v311
        %v390 = vunpack.c.h.b16 %v311
        %v391 = vunpack.c.l.b16 %v312
        %v392 = vunpack.c.l.b16 %v313
        %v393 = vunpack.c.h.b16 %v313
        %v394 = vunpack.c.l.b16 %v314
        %v395 = vunpack.c.l.b16 %v315
        %v396 = vunpack.c.h.b16 %v315
        %v397 = vunpack.c.l.b16 %v316
        %v398 = vunpack.c.l.b16 %v317
        %v399 = vunpack.c.h.b16 %v317
        %v400 = vunpack.c.l.b16 %v318
        %v401 = vunpack.c.l.b16 %v319
        %v402 = vunpack.c.h.b16 %v319
        %v403 = vunpack.c.l.b16 %v320
        %v404 = vunpack.c.l.b16 %v321
        %v405 = vunpack.c.h.b16 %v321
        %v406 = vunpack.c.l.b16 %v322
        %v407 = vunpack.c.l.b16 %v323
        %v408 = vunpack.c.h.b16 %v323
        %v409 = vunpack.c.l.b16 %v324
        %v410 = vunpack.c.l.b16 %v325
        %v411 = vunpack.c.h.b16 %v325
        %v412 = vunpack.c.l.b16 %v326
        %v413 = vpack.c.b16 %v368, %v365
        %v414 = vpack.c.b16 %v369, %v366
        %v415 = vpack.c.b16 %v370, %v367
        %v416 = vpack.c.b16 %v374, %v371
        %v417 = vpack.c.b16 %v375, %v372
        %v418 = vpack.c.b16 %v376, %v373
        %v419 = vpack.c.b16 %v380, %v377
        %v420 = vpack.c.b16 %v381, %v378
        %v421 = vpack.c.b16 %v382, %v379
        %v422 = vpack.c.b16 %v386, %v383
        %v423 = vpack.c.b16 %v387, %v384
        %v424 = vpack.c.b16 %v388, %v385
        %v425 = vpack.c.b16 %v392, %v389
        %v426 = vpack.c.b16 %v393, %v390
        %v427 = vpack.c.b16 %v394, %v391
        %v428 = vpack.c.b16 %v398, %v395
        %v429 = vpack.c.b16 %v399, %v396
        %v430 = vpack.c.b16 %v400, %v397
        %v431 = vpack.c.b16 %v404, %v401
        %v432 = vpack.c.b16 %v405, %v402
        %v433 = vpack.c.b16 %v406, %v403
        %v434 = vpack.c.b16 %v410, %v407
        %v435 = vpack.c.b16 %v411, %v408
        %v436 = vpack.c.b16 %v412, %v409
        %461 = vmatprep.subr.bf16.mxu0 %v435
        %462 = vmatpush1.bf16.msra.mxu0 %v434
        %463 = vmatprep.subr.bf16.mxu0 %v432
        %464 = vmatpush1.bf16.msra.mxu0 %v431
        %465 = vmatprep.subr.bf16.mxu0 %v429
        %466 = vmatpush1.bf16.msra.mxu0 %v428
        %467 = vmatprep.subr.bf16.mxu0 %v426
        %468 = vmatpush1.bf16.msra.mxu0 %v425
        %469 = vmatprep.subr.bf16.mxu0 %v423
        %470 = vmatpush1.bf16.msra.mxu0 %v422
        %471 = vmatprep.subr.bf16.mxu0 %v420
        %472 = vmatpush1.bf16.msra.mxu0 %v419
        %473 = vmatprep.subr.bf16.mxu0 %v417
        %474 = vmatpush1.bf16.msra.mxu0 %v416
        %475 = vmatprep.subr.bf16.mxu0 %v414
        %476 = vmatpush1.bf16.msra.mxu0 %v413
        %477 = vmatprep.subr.bf16.mxu0 0
        %478 = vmatpush2.bf16.msra.mxu0 0
        %479 = vmatprep.subr.bf16.mxu0 0
        %480 = vmatpush2.bf16.msra.mxu0 0
        %481 = vmatprep.subr.bf16.mxu0 0
        %482 = vmatpush2.bf16.msra.mxu0 0
        %483 = vmatprep.subr.bf16.mxu0 0
        %484 = vmatpush2.bf16.msra.mxu0 0
        %485 = vmatprep.subr.bf16.mxu0 0
        %486 = vmatpush2.bf16.msra.mxu0 0
        %487 = vmatprep.subr.bf16.mxu0 0
        %488 = vmatpush2.bf16.msra.mxu0 0
        %489 = vmatprep.subr.bf16.mxu0 0
        %490 = vmatpush2.bf16.msra.mxu0 0
        %491 = vmatprep.subr.bf16.mxu0 0
        %492 = vmatpush2.bf16.msra.mxu0 0
        %493 = vmatprep.mubr.bf16.mxu0 0
        %494 = vmatmul.mubr.bf16.gmra.mxu0 %v331
        %v495 = vpop.f32.mrf.mxu0
        %v496 = vadd.f32 0.0, %v495
        %v497 = vpop.f32.mrf.mxu0
        %v498 = vadd.f32 0.0, %v497
        %v499 = vpop.f32.mrf.mxu0
        %v500 = vadd.f32 0.0, %v499
        %v501 = vpop.f32.mrf.mxu0
        %v502 = vadd.f32 0.0, %v501
        %503 = vdwg.mxu0
        %504 = vmatprep.subr.bf16.mxu0 0
        %505 = vmatpush1.bf16.msra.mxu0 %v436
        %506 = vmatprep.subr.bf16.mxu0 0
        %507 = vmatpush1.bf16.msra.mxu0 %v433
        %508 = vmatprep.subr.bf16.mxu0 0
        %509 = vmatpush1.bf16.msra.mxu0 %v430
        %510 = vmatprep.subr.bf16.mxu0 0
        %511 = vmatpush1.bf16.msra.mxu0 %v427
        %512 = vmatprep.subr.bf16.mxu0 0
        %513 = vmatpush1.bf16.msra.mxu0 %v424
        %514 = vmatprep.subr.bf16.mxu0 0
        %515 = vmatpush1.bf16.msra.mxu0 %v421
        %516 = vmatprep.subr.bf16.mxu0 0
        %517 = vmatpush1.bf16.msra.mxu0 %v418
        %518 = vmatprep.subr.bf16.mxu0 0
        %519 = vmatpush1.bf16.msra.mxu0 %v415
        %520 = vmatprep.subr.bf16.mxu0 0
        %521 = vmatpush2.bf16.msra.mxu0 0
        %522 = vmatprep.subr.bf16.mxu0 0
        %523 = vmatpush2.bf16.msra.mxu0 0
        %524 = vmatprep.subr.bf16.mxu0 0
        %525 = vmatpush2.bf16.msra.mxu0 0
        %526 = vmatprep.subr.bf16.mxu0 0
        %527 = vmatpush2.bf16.msra.mxu0 0
        %528 = vmatprep.subr.bf16.mxu0 0
        %529 = vmatpush2.bf16.msra.mxu0 0
        %530 = vmatprep.subr.bf16.mxu0 0
        %531 = vmatpush2.bf16.msra.mxu0 0
        %532 = vmatprep.subr.bf16.mxu0 0
        %533 = vmatpush2.bf16.msra.mxu0 0
        %534 = vmatprep.subr.bf16.mxu0 0
        %535 = vmatpush2.bf16.msra.mxu0 0
        %536 = vmatprep.mubr.bf16.mxu0 0
        %537 = vmatmul.mubr.bf16.gmra.mxu0 %v331
        %v538 = vpop.f32.mrf.mxu0
        %v539 = vadd.f32 0.0, %v538
        %v540 = vpop.f32.mrf.mxu0
        %v541 = vpop.f32.mrf.mxu0
        %v542 = vadd.f32 0.0, %v541
        %v543 = vpop.f32.mrf.mxu0
        %544 = vdwg.mxu0
        %v545 = vld [vmem:[#allocation8] sm:$0xff]
        %v546 = vld [vmem:[#allocation8 + $0x8] sm:$0xf]
        %v547 = vld [vmem:[#allocation8 + $0xc] sm:$0xff]
        %v548 = vld [vmem:[#allocation8 + $0x14] sm:$0xf]
        %v549 = vld [vmem:[#allocation8 + $0x18] sm:$0xff]
        %v550 = vld [vmem:[#allocation8 + $0x20] sm:$0xf]
        %v551 = vld [vmem:[#allocation8 + $0x24] sm:$0xff]
        %v552 = vld [vmem:[#allocation8 + $0x2c] sm:$0xf]
        %v553 = vld [vmem:[#allocation8 + $0x30] sm:$0xff]
        %v554 = vld [vmem:[#allocation8 + $0x38] sm:$0xf]
        %v555 = vld [vmem:[#allocation8 + $0x3c] sm:$0xff]
        %v556 = vld [vmem:[#allocation8 + $0x44] sm:$0xf]
        %v557 = vld [vmem:[#allocation8 + $0x48] sm:$0xff]
        %v558 = vld [vmem:[#allocation8 + $0x50] sm:$0xf]
        %v559 = vld [vmem:[#allocation8 + $0x54] sm:$0xff]
        %v560 = vld [vmem:[#allocation8 + $0x5c] sm:$0xf]
        %v561 = vld [vmem:[#allocation8 + $0x60] sm:$0xff]
        %v562 = vld [vmem:[#allocation8 + $0x68] sm:$0xf]
        %v563 = vld [vmem:[#allocation8 + $0x6c] sm:$0xff]
        %v564 = vld [vmem:[#allocation8 + $0x74] sm:$0xf]
        %v565 = vld [vmem:[#allocation8 + $0x78] sm:$0xff]
        %v566 = vld [vmem:[#allocation8 + $0x80] sm:$0xf]
        %v567 = vld [vmem:[#allocation8 + $0x84] sm:$0xff]
        %v568 = vld [vmem:[#allocation8 + $0x8c] sm:$0xf]
        %v569 = vld [vmem:[#allocation8 + $0x90] sm:$0xff]
        %v570 = vld [vmem:[#allocation8 + $0x98] sm:$0xf]
        %v571 = vld [vmem:[#allocation8 + $0x9c] sm:$0xff]
        %v572 = vld [vmem:[#allocation8 + $0xa4] sm:$0xf]
        %v573 = vld [vmem:[#allocation8 + $0xa8] sm:$0xff]
        %v574 = vld [vmem:[#allocation8 + $0xb0] sm:$0xf]
        %v575 = vld [vmem:[#allocation8 + $0xb4] sm:$0xff]
        %v576 = vld [vmem:[#allocation8 + $0xbc] sm:$0xf]
        %v579 = vunpack.c.l.b16 %v291
        %v580 = vunpack.c.l.b16 %v292
        %v581 = vpack.c.b16 %v580, %v579
        %v615 = vunpack.c.l.b16 %v545
        %v616 = vunpack.c.h.b16 %v545
        %v617 = vunpack.c.l.b16 %v546
        %v618 = vunpack.c.l.b16 %v547
        %v619 = vunpack.c.h.b16 %v547
        %v620 = vunpack.c.l.b16 %v548
        %v621 = vunpack.c.l.b16 %v549
        %v622 = vunpack.c.h.b16 %v549
        %v623 = vunpack.c.l.b16 %v550
        %v624 = vunpack.c.l.b16 %v551
        %v625 = vunpack.c.h.b16 %v551
        %v626 = vunpack.c.l.b16 %v552
        %v627 = vunpack.c.l.b16 %v553
        %v628 = vunpack.c.h.b16 %v553
        %v629 = vunpack.c.l.b16 %v554
        %v630 = vunpack.c.l.b16 %v555
        %v631 = vunpack.c.h.b16 %v555
        %v632 = vunpack.c.l.b16 %v556
        %v633 = vunpack.c.l.b16 %v557
        %v634 = vunpack.c.h.b16 %v557
        %v635 = vunpack.c.l.b16 %v558
        %v636 = vunpack.c.l.b16 %v559
        %v637 = vunpack.c.h.b16 %v559
        %v638 = vunpack.c.l.b16 %v560
        %v639 = vunpack.c.l.b16 %v561
        %v640 = vunpack.c.h.b16 %v561
        %v641 = vunpack.c.l.b16 %v562
        %v642 = vunpack.c.l.b16 %v563
        %v643 = vunpack.c.h.b16 %v563
        %v644 = vunpack.c.l.b16 %v564
        %v645 = vunpack.c.l.b16 %v565
        %v646 = vunpack.c.h.b16 %v565
        %v647 = vunpack.c.l.b16 %v566
        %v648 = vunpack.c.l.b16 %v567
        %v649 = vunpack.c.h.b16 %v567
        %v650 = vunpack.c.l.b16 %v568
        %v651 = vunpack.c.l.b16 %v569
        %v652 = vunpack.c.h.b16 %v569
        %v653 = vunpack.c.l.b16 %v570
        %v654 = vunpack.c.l.b16 %v571
        %v655 = vunpack.c.h.b16 %v571
        %v656 = vunpack.c.l.b16 %v572
        %v657 = vunpack.c.l.b16 %v573
        %v658 = vunpack.c.h.b16 %v573
        %v659 = vunpack.c.l.b16 %v574
        %v660 = vunpack.c.l.b16 %v575
        %v661 = vunpack.c.h.b16 %v575
        %v662 = vunpack.c.l.b16 %v576
        %v663 = vpack.c.b16 %v618, %v615
        %v664 = vpack.c.b16 %v619, %v616
        %v665 = vpack.c.b16 %v620, %v617
        %v666 = vpack.c.b16 %v624, %v621
        %v667 = vpack.c.b16 %v625, %v622
        %v668 = vpack.c.b16 %v626, %v623
        %v669 = vpack.c.b16 %v630, %v627
        %v670 = vpack.c.b16 %v631, %v628
        %v671 = vpack.c.b16 %v632, %v629
        %v672 = vpack.c.b16 %v636, %v633
        %v673 = vpack.c.b16 %v637, %v634
        %v674 = vpack.c.b16 %v638, %v635
        %v675 = vpack.c.b16 %v642, %v639
        %v676 = vpack.c.b16 %v643, %v640
        %v677 = vpack.c.b16 %v644, %v641
        %v678 = vpack.c.b16 %v648, %v645
        %v679 = vpack.c.b16 %v649, %v646
        %v680 = vpack.c.b16 %v650, %v647
        %v681 = vpack.c.b16 %v654, %v651
        %v682 = vpack.c.b16 %v655, %v652
        %v683 = vpack.c.b16 %v656, %v653
        %v684 = vpack.c.b16 %v660, %v657
        %v685 = vpack.c.b16 %v661, %v658
        %v686 = vpack.c.b16 %v662, %v659
        %711 = vmatprep.subr.bf16.mxu0 %v685
        %712 = vmatpush1.bf16.msra.mxu0 %v684
        %713 = vmatprep.subr.bf16.mxu0 %v682
        %714 = vmatpush1.bf16.msra.mxu0 %v681
        %715 = vmatprep.subr.bf16.mxu0 %v679
        %716 = vmatpush1.bf16.msra.mxu0 %v678
        %717 = vmatprep.subr.bf16.mxu0 %v676
        %718 = vmatpush1.bf16.msra.mxu0 %v675
        %719 = vmatprep.subr.bf16.mxu0 %v673
        %720 = vmatpush1.bf16.msra.mxu0 %v672
        %721 = vmatprep.subr.bf16.mxu0 %v670
        %722 = vmatpush1.bf16.msra.mxu0 %v669
        %723 = vmatprep.subr.bf16.mxu0 %v667
        %724 = vmatpush1.bf16.msra.mxu0 %v666
        %725 = vmatprep.subr.bf16.mxu0 %v664
        %726 = vmatpush1.bf16.msra.mxu0 %v663
        %727 = vmatprep.subr.bf16.mxu0 0
        %728 = vmatpush2.bf16.msra.mxu0 0
        %729 = vmatprep.subr.bf16.mxu0 0
        %730 = vmatpush2.bf16.msra.mxu0 0
        %731 = vmatprep.subr.bf16.mxu0 0
        %732 = vmatpush2.bf16.msra.mxu0 0
        %733 = vmatprep.subr.bf16.mxu0 0
        %734 = vmatpush2.bf16.msra.mxu0 0
        %735 = vmatprep.subr.bf16.mxu0 0
        %736 = vmatpush2.bf16.msra.mxu0 0
        %737 = vmatprep.subr.bf16.mxu0 0
        %738 = vmatpush2.bf16.msra.mxu0 0
        %739 = vmatprep.subr.bf16.mxu0 0
        %740 = vmatpush2.bf16.msra.mxu0 0
        %741 = vmatprep.subr.bf16.mxu0 0
        %742 = vmatpush2.bf16.msra.mxu0 0
        %743 = vmatprep.mubr.bf16.mxu0 0
        %744 = vmatmul.mubr.bf16.gmra.mxu0 %v581
        %v745 = vpop.f32.mrf.mxu0
        %v746 = vadd.f32 0.0, %v745
        %v747 = vpop.f32.mrf.mxu0
        %v748 = vadd.f32 0.0, %v747
        %v749 = vpop.f32.mrf.mxu0
        %v750 = vadd.f32 0.0, %v749
        %v751 = vpop.f32.mrf.mxu0
        %v752 = vadd.f32 0.0, %v751
        %753 = vdwg.mxu0
        %754 = vmatprep.subr.bf16.mxu0 0
        %755 = vmatpush1.bf16.msra.mxu0 %v686
        %756 = vmatprep.subr.bf16.mxu0 0
        %757 = vmatpush1.bf16.msra.mxu0 %v683
        %758 = vmatprep.subr.bf16.mxu0 0
        %759 = vmatpush1.bf16.msra.mxu0 %v680
        %760 = vmatprep.subr.bf16.mxu0 0
        %761 = vmatpush1.bf16.msra.mxu0 %v677
        %762 = vmatprep.subr.bf16.mxu0 0
        %763 = vmatpush1.bf16.msra.mxu0 %v674
        %764 = vmatprep.subr.bf16.mxu0 0
        %765 = vmatpush1.bf16.msra.mxu0 %v671
        %766 = vmatprep.subr.bf16.mxu0 0
        %767 = vmatpush1.bf16.msra.mxu0 %v668
        %768 = vmatprep.subr.bf16.mxu0 0
        %769 = vmatpush1.bf16.msra.mxu0 %v665
        %770 = vmatprep.subr.bf16.mxu0 0
        %771 = vmatpush2.bf16.msra.mxu0 0
        %772 = vmatprep.subr.bf16.mxu0 0
        %773 = vmatpush2.bf16.msra.mxu0 0
        %774 = vmatprep.subr.bf16.mxu0 0
        %775 = vmatpush2.bf16.msra.mxu0 0
        %776 = vmatprep.subr.bf16.mxu0 0
        %777 = vmatpush2.bf16.msra.mxu0 0
        %778 = vmatprep.subr.bf16.mxu0 0
        %779 = vmatpush2.bf16.msra.mxu0 0
        %780 = vmatprep.subr.bf16.mxu0 0
        %781 = vmatpush2.bf16.msra.mxu0 0
        %782 = vmatprep.subr.bf16.mxu0 0
        %783 = vmatpush2.bf16.msra.mxu0 0
        %784 = vmatprep.subr.bf16.mxu0 0
        %785 = vmatpush2.bf16.msra.mxu0 0
        %786 = vmatprep.mubr.bf16.mxu0 0
        %787 = vmatmul.mubr.bf16.gmra.mxu0 %v581
        %v788 = vpop.f32.mrf.mxu0
        %v789 = vadd.f32 0.0, %v788
        %v790 = vpop.f32.mrf.mxu0
        %v791 = vpop.f32.mrf.mxu0
        %v792 = vadd.f32 0.0, %v791
        %v793 = vpop.f32.mrf.mxu0
        %794 = vdwg.mxu0
        %v795 = vadd.f32 %v496, %v746
        %v796 = vadd.f32 %v500, %v750
        %v797 = vxor.u32 %v795, 2147483648
        %v798 = vxor.u32 %v796, 2147483648
        %v799 = vmul.f32 %v797, 1.442695
        %v800 = vpow.pop %v799
        %v801 = vmul.f32 %v798, 1.442695
        %v802 = vpow.pop %v801
        %v803 = vadd.f32 %v800, 1.0
        %v804 = vadd.f32 %v802, 1.0
        %v805 = vrcp.pop %v803
        %v806 = vmul.f32 1.0, %v805
        %v807 = vrcp.pop %v804
        %v808 = vmul.f32 1.0, %v807
        %v809 = vadd.f32 %v498, %v748
        %v810 = vadd.f32 %v502, %v752
        %v811 = vxor.u32 %v809, 2147483648
        %v812 = vxor.u32 %v810, 2147483648
        %v813 = vmul.f32 %v811, 1.442695
        %v814 = vpow.pop %v813
        %v815 = vmul.f32 %v812, 1.442695
        %v816 = vpow.pop %v815
        %v817 = vadd.f32 %v814, 1.0
        %v818 = vadd.f32 %v816, 1.0
        %v819 = vrcp.pop %v817
        %v820 = vmul.f32 1.0, %v819
        %v821 = vrcp.pop %v818
        %v822 = vmul.f32 1.0, %v821
        %v823 = vmul.f32 %v820, %v789
        %v824 = vmul.f32 %v822, %v792
        %v825 = vadd.f32 %v539, %v823
        %v826 = vadd.f32 %v542, %v824
        %v827 = vtanh.pop %v825
        %v828 = vtanh.pop %v826
        %v829 = vsub.f32 1.0, %v806
        %v830 = vsub.f32 1.0, %v808
        %v831 = vmul.f32 %v829, %v293
        %v832 = vmul.f32 %v830, %v294
        %v833 = vmul.f32 %v806, %v827
        %v834 = vmul.f32 %v808, %v828
        %v835 = vadd.f32 %v831, %v833
        %v836 = vadd.f32 %v832, %v834
        %837 = vst [vmem:[%s284] sm:$0xff] %v835
        %838 = vst [vmem:[%s284 + $0x8] sm:$0xff] %v836
        %s839 = sand.u32 %s127, 1
        %s840 = scalar_lea.sflag [#allocation4], %s839
        %s841 = sand.u32 %s127, 1
        %s842 = smul.addr %s841, 16
        %s843 = scalar_lea.vmem [#allocation10], %s842
        // Predicated region
        $region53: #{tpu_custom_call.1} parent=35 // pred_check
          %p844 = pneg %p137
        $region54: #{tpu_custom_call.1} parent=35 // pred_check_branch
          %846 = sbr.rel (%p844) target = $region56
        $region55: #{tpu_custom_call.1} parent=35 // pred_region
          %s847 = smul.u32 2, %s25
          %s849 = ssub.s32 256, 256
          %850 = vsyncadd %s840, %s849
          %s851 = smul.addr %s847, 128
          %s852 = scalar_lea.hbm %s4, %s851
          %s853 = sshll.u32 %s843, 4
          %s854 = int_to_ptr.vmem [resolvable:$true] %s853
          %859 = dma.vmem_to_hbm [thread:$0]  %s854, 256, %s852, %s840, 128, 128, 8
        $region56: #{tpu_custom_call.1} parent=35 // pred_fallthru
          _
      $region36: #{tpu_custom_call.1} parent=5 // pred_fallthru
        _
      %p860 = scmp.le.s32.totalorder 2, %s20
      // Predicated region
      $region57: #{tpu_custom_call.1} parent=5 // pred_check
        %p861 = pneg %p860
      $region58: #{tpu_custom_call.1} parent=5 // pred_check_branch
        %863 = sbr.rel (%p861) target = $region60
      $region59: #{tpu_custom_call.1} parent=5 // pred_region
        %s864 = ssub.s32 %s20, 2
        // Predicated region
        $region61: #{tpu_custom_call.1} parent=59 // pred_check
          %p865 = pneg %p143
        $region62: #{tpu_custom_call.1} parent=59 // pred_check_branch
          %867 = sbr.rel (%p865) target = $region64
        $region63: #{tpu_custom_call.1} parent=59 // pred_region
          %s868 = sand.u32 %s128, 1
          %s869 = scalar_lea.sflag [#allocation4], %s868
          %s870 = sand.u32 %s128, 1
          %s871 = smul.addr %s870, 16
          %s872 = scalar_lea.vmem [#allocation10], %s871
          %873 = dma.done %s869, 256
        $region64: #{tpu_custom_call.1} parent=59 // pred_fallthru
          _
      $region60: #{tpu_custom_call.1} parent=5 // pred_fallthru
        _
    $region6: #{tpu_custom_call.1} parent=1 // loop_footer
      %s24 = sadd.s32 1, %s20
    $region7: #{tpu_custom_call.1} parent=1 // loop_footer_branch
      %19 = sbr.rel target = $region3
    $region8: #{tpu_custom_call.1} parent=1 // loop_exit
      _
    %874 = vsyncpa [#allocation3], 1
    %s875 = scalar_lea.sflag [#allocation3], 1
    %876 = vsyncpa %s875, 1
    %877 = vsyncpa [#allocation6], 1
    %s878 = scalar_lea.sflag [#allocation6], 1
    %879 = vsyncpa %s878, 1
    %880 = vsyncpa [#allocation9], 1
    %881 = vsyncpa [#allocation4], 1
    %s882 = scalar_lea.sflag [#allocation4], 1
    %883 = vsyncpa %s882, 1

</llo_original>
